<compile_context>
chip_gen: v6e
topology: v6e:2x2x1
jax: 0.10.0
libtpu: 0.0.40
codegen_flags: <defaults>
</compile_context>

<pallas_src>
import functools

import jax
import jax.numpy as jnp
import numpy as np
from jax.experimental import pallas as pl
from jax.experimental.pallas import tpu as pltpu


# -----------------------------------------------------------------------------
# Host-side (init-time) gaussian weight maps — faithful numpy port of
# gaussian_heatmap_2d + shu_org.__init__ map construction.
# -----------------------------------------------------------------------------
def _gaussian_heatmap_2d(size, c, v, merge_type='max'):
    h, w = size
    coordh = np.arange(0, h)[:, np.newaxis] * np.ones((1, w))
    coordw = np.arange(0, w)[np.newaxis, :] * np.ones((h, 1))
    coord = np.stack([coordh, coordw])
    x = np.zeros(size, dtype=float)
    for ci, vi in zip(c, v):
        ci = ci[:, np.newaxis, np.newaxis]
        dx = coord - ci
        try:
            _, singv, _ = np.linalg.svd(vi)
        except np.linalg.LinAlgError:
            continue
        maxstd = np.sqrt(np.max(singv))
        searchr = int(3 * maxstd + 1)
        ciint = ci.astype(int)
        chint, cwint = ciint[0, 0, 0], ciint[1, 0, 0]
        searchh = [max(min(i, size[0]), 0) for i in [chint - searchr, chint + searchr]]
        searchw = [max(min(i, size[1]), 0) for i in [cwint - searchr, cwint + searchr]]
        sh, sw = searchh[1] - searchh[0], searchw[1] - searchw[0]
        dx = dx[:, searchh[0]:searchh[1], searchw[0]:searchw[1]]
        if sh == 0 or sw == 0:
            continue
        xref = x[searchh[0]:searchh[1], searchw[0]:searchw[1]]
        try:
            vi_inv = np.linalg.inv(vi)
        except np.linalg.LinAlgError:
            continue
        dxf = dx.transpose(1, 2, 0).reshape(-1, 2)
        xi = dxf @ vi_inv
        xi = (xi * dxf).sum(-1).reshape(sh, sw)
        xi = np.exp(-0.5 * xi)
        if merge_type == 'max':
            xref[:, :] = np.maximum(xref, xi)
        else:
            xref[:, :] = xref + xi
    return x


def build_gaussian_weight_maps(input_res, lowest_res, tail_sigma_mult=3,
                               gaussian_at_input_res=False):
    reslist = [2 ** i for i in range(int(np.log2(lowest_res)),
                                     int(np.log2(input_res)) + 1)]
    reslistrev = reslist[::-1]
    gmap = {}
    for idx, resi in enumerate(reslistrev):
        if idx != 0 or gaussian_at_input_res:
            center = np.array([resi // 2 - 1, 0], dtype=float)
            sigma = resi // 2 / tail_sigma_mult
            variance = np.array([[sigma ** 2, 0], [0, sigma ** 2]], dtype=float)
            gmap[resi] = _gaussian_heatmap_2d([resi, resi // 2 + 1],
                                              center[None], variance[None])
            if idx != 0:
                rp = reslistrev[idx - 1]
                gmap[rp][rp // 2 - resi // 2:rp // 2 + resi // 2,
                         0:resi // 2 + 1] -= gmap[resi]
        else:
            gmap[resi] = np.ones([resi, resi // 2 + 1], dtype=float)
    return reslist, {r: np.asarray(gmap[r], np.float32) for r in reslist}


def build_flat_gaussian_maps(reslist, gmaps_np, wf, input_res):
    """Fold BOTH H-axis rolls of the torch forward (the initial fftshift-style
    roll and the per-resolution un-roll) into the constant gaussian maps.

    With Y = relu(conv(.)) applied to the *unshifted* rfft spectrum:
        out[j, w] = Y[rowY(j), w] * g[(j + shift) % r, w]
    where shift = r - r//2 - 1, rowY(j) = j for j < r//2+1 and
    rowY(j) = H - r + j otherwise.  The kernel therefore only needs two
    contiguous, static lane slices of the flat (2C, H*Wf) spectrum per
    resolution — zero in-kernel relayouts.  Maps are padded from r//2+1 to the
    full rfft width Wf with zeros so whole spectrum rows can be sliced; the
    padded columns are dropped in the wrapper before the irfft.
    """
    del input_res  # only the row mapping above depends on it (handled in kernel)
    flat = {}
    for r in reslist:
        shift = r - r // 2 - 1
        wfi = r // 2 + 1
        rolled = np.roll(gmaps_np[r], -shift, axis=0)      # rolled[j] = g[(j+shift)%r]
        padded = np.zeros((r, wf), np.float32)
        padded[:, :wfi] = rolled
        flat[r] = jnp.asarray(padded.reshape(1, r * wf))
    return flat


# -----------------------------------------------------------------------------
# Pallas kernel.  One grid step = `bb` batch elements (bb = B on 1-TC chips,
# bb = 1 on 2-TC v7x so both cores get work).
#   inputs : stacked real/imag spectrum (bb, 2C, H*Wf)  [VMEM]
#            conv weight (2C, 2C), conv bias (2C, 1)    [VMEM]
#            one pre-rolled flat gaussian per resolution (1, r*Wf)
#   outputs: one (bb, 2C, r*Wf) flat slab per resolution
#            (channels 0:C = real part, C:2C = imag part; row-major (r, Wf))
# -----------------------------------------------------------------------------
def shu_kernel(reslist, H, Wf, bb, x_ref, w_ref, b_ref, *refs):
    n_res = len(reslist)
    g_refs = refs[:n_res]
    out_refs = refs[n_res:]

    w = w_ref[...]                       # (2C, 2C)
    b = b_ref[...]                       # (2C, 1)

    for bi in range(bb):
        x2d = x_ref[bi]                  # (2C, H*Wf) flat spectrum, unshifted
        # 1x1 conv (2C -> 2C) as a single MXU matmul + ReLU.
        y = jnp.dot(w, x2d, preferred_element_type=jnp.float32) + b
        y = jnp.maximum(y, 0.0)
        # TODO(synk): self.df1 (heterogeneous_filter) has no definition in the
        # provided spec; it is treated as identity here.

        # Per-resolution low-frequency band selection + pre-rolled gaussian
        # weighting.  Both torch rolls are already folded into g, so the band
        # is just two contiguous lane ranges of the flat spectrum.
        for idx, r in enumerate(reslist):
            top = r // 2 + 1             # rows taken from the positive-freq end
            bot = r - top                # rows taken from the negative-freq end
            g = g_refs[idx][...]         # (1, r*Wf)
            if bot == 0 or r == H:
                # r == H: the two ranges are contiguous and cover all rows,
                # so this is one lane-dense (2C, H*Wf) store.
                out_refs[idx][bi] = y[:, :r * Wf] * g
            else:
                out_refs[idx][bi, :, :top * Wf] = (
                    y[:, :top * Wf] * g[:, :top * Wf])
                out_refs[idx][bi, :, top * Wf:] = (
                    y[:, (H - bot) * Wf:] * g[:, top * Wf:])


# -----------------------------------------------------------------------------
# Wrapper: FFT glue (no Pallas FFT primitive) around one fused pallas_call.
# -----------------------------------------------------------------------------
def shu_org_forward(x, params, reslist, gflat, *, batch_grid=1):
    B, C, H, W = x.shape
    assert H == W, "shu_org assumes square input (input_res x input_res)"
    Wf = W // 2 + 1
    C2 = 2 * C
    HWf = H * Wf

    ffted = jnp.fft.rfftn(x.astype(jnp.float32) + 1e-8, axes=(-2, -1))
    stacked = jnp.concatenate([jnp.real(ffted), jnp.imag(ffted)], axis=1)
    stacked = stacked.reshape(B, C2, HWf)          # free trailing-dim merge

    n_steps = batch_grid if (batch_grid and B % batch_grid == 0) else 1
    bb = B // n_steps

    g_args = tuple(gflat[r] for r in reslist)
    kernel = functools.partial(shu_kernel, tuple(reslist), H, Wf, bb)

    out_shape = tuple(
        jax.ShapeDtypeStruct((B, C2, r * Wf), jnp.float32) for r in reslist)
    in_specs = [
        pl.BlockSpec((bb, C2, HWf), lambda i: (i, 0, 0)),      # spectrum
        pl.BlockSpec((C2, C2), lambda i: (0, 0)),              # conv weight (VMEM)
        pl.BlockSpec((C2, 1), lambda i: (0, 0)),               # conv bias   (VMEM)
    ] + [pl.BlockSpec(g.shape, lambda i: (0, 0)) for g in g_args]
    out_specs = tuple(
        pl.BlockSpec((bb, C2, r * Wf), lambda i: (i, 0, 0)) for r in reslist)

    outs = pl.pallas_call(
        kernel,
        out_shape=out_shape,
        grid_spec=pltpu.PrefetchScalarGridSpec(
            num_scalar_prefetch=0,
            grid=(n_steps,),
            in_specs=in_specs,
            out_specs=out_specs,
        ),
        compiler_params=pltpu.CompilerParams(
            dimension_semantics=("parallel",)),
    )(stacked, params['w'], params['b'].reshape(C2, 1), *g_args)

    output = {}
    for r, o in zip(reslist, outs):
        o = o.reshape(B, C2, r, Wf)[:, :, :, : r // 2 + 1]     # drop pad columns
        comp = jax.lax.complex(o[:, :C], o[:, C:])
        output[r] = jnp.fft.irfftn(comp + 1e-8, axes=(2, 3))
    return output


def _batch_grid_steps(batch):
    """v7x has 2 TensorCores/chip -> shard the batch across a parallel grid.
    v5e/v6e are single-TC: one grid step holding the whole batch avoids the
    ~0.35us-per-step pipeline overhead on KB-scale tiles."""
    try:
        kind = jax.devices()[0].device_kind.lower()
    except Exception:
        return 1
    if batch > 1 and ('v7' in kind or '7x' in kind):
        return batch
    return 1


# -----------------------------------------------------------------------------
# Pure-JAX reference (same df1-identity semantics) for correctness checking.
# Mirrors the torch forward literally (shift / band / gaussian / un-shift).
# -----------------------------------------------------------------------------
def shu_org_reference(x, params, reslist, gmaps):
    B, C, H, W = x.shape
    ffted = jnp.fft.rfftn(x.astype(jnp.float32) + 1e-8, axes=(-2, -1))
    k = ffted.shape[2] // 2 + 1
    ffted = jnp.concatenate([ffted[:, :, k:, :], ffted[:, :, :k, :]], axis=2)
    stacked = jnp.concatenate([jnp.real(ffted), jnp.imag(ffted)], axis=1)
    y = jnp.einsum('oc,bchw->bohw', params['w'], stacked,
                   precision=jax.lax.Precision.HIGHEST) \
        + params['b'][None, :, None, None]
    y = jnp.maximum(y, 0.0)
    comp = jax.lax.complex(y[:, :C], y[:, C:])
    out = {}
    for r in reslist:
        r0 = H // 2 - r // 2
        s = comp[:, :, r0:r0 + r, 0:r // 2 + 1] * gmaps[r][None, None]
        shift = r - r // 2 - 1
        s = jnp.concatenate([s[:, :, shift:, :], s[:, :, :shift, :]], axis=2)
        out[r] = jnp.fft.irfftn(s + 1e-8, axes=(2, 3))
    return out


if __name__ == "__main__":
    # Small shapes consistent with the module: input_res = 16, lowest_res = 4.
    B, C, H, W = 2, 4, 16, 16
    key = jax.random.PRNGKey(0)
    kx, kw, kb = jax.random.split(key, 3)
    x = jax.random.normal(kx, (B, C, H, W), jnp.float32)
    C2 = 2 * C
    params = {
        'w': (1.0 / C2) + (0.1 / C2) * jax.random.normal(kw, (C2, C2), jnp.float32),
        'b': 0.02 * jax.random.normal(kb, (C2,), jnp.float32),
    }

    reslist, gmaps_np = build_gaussian_weight_maps(input_res=H, lowest_res=H // 4)
    gflat = build_flat_gaussian_maps(reslist, gmaps_np, W // 2 + 1, H)
    gmaps_jnp = {r: jnp.asarray(gmaps_np[r]) for r in reslist}

    n_steps = _batch_grid_steps(B)
    fwd = jax.jit(functools.partial(shu_org_forward, reslist=tuple(reslist),
                                    gflat=gflat, batch_grid=n_steps))
    out = jax.block_until_ready(fwd(x, params))

    ref = jax.block_until_ready(
        shu_org_reference(x, params, tuple(reslist), gmaps_jnp))

    err = 0.0
    for r in reslist:
        assert out[r].shape == (B, C, r, r)
        err = max(err, float(jnp.max(jnp.abs(out[r] - ref[r]))))
    # Tolerance allows for the MXU f32 matmul pass precision vs the
    # HIGHEST-precision XLA einsum reference; structural errors are >= 1e-1.
    assert err < 3e-2, f"max abs error {err}"
    print("KERNEL_OK")
</pallas_src>

<mosaic_0001>
module attributes {stable_mosaic.version = 11 : i64} {
  func.func @shu_kernel(%arg0: i32, %arg1: memref<2x8x144xf32, #tpu.memory_space<vmem>>, %arg2: memref<8x8xf32, #tpu.memory_space<vmem>>, %arg3: memref<8x1xf32, #tpu.memory_space<vmem>>, %arg4: memref<1x36xf32, #tpu.memory_space<vmem>>, %arg5: memref<1x72xf32, #tpu.memory_space<vmem>>, %arg6: memref<1x144xf32, #tpu.memory_space<vmem>>, %arg7: memref<2x8x36xf32, #tpu.memory_space<vmem>>, %arg8: memref<2x8x72xf32, #tpu.memory_space<vmem>>, %arg9: memref<2x8x144xf32, #tpu.memory_space<vmem>>) attributes {dimension_semantics = [#tpu.dimension_semantics<parallel>], iteration_bounds = array<i64: 1>, scalar_prefetch = 0 : i64, scratch_operands = 0 : i64, tpu.core_type = #tpu.core_type<tc>, window_params = [{transform_indices = @transform_0, window_bounds = array<i64: 2, 8, 144>}, {pipeline_mode = #tpu.pipeline_mode<synchronous>, transform_indices = @transform_1, window_bounds = array<i64: 8, 8>}, {pipeline_mode = #tpu.pipeline_mode<synchronous>, transform_indices = @transform_2, window_bounds = array<i64: 8, 1>}, {pipeline_mode = #tpu.pipeline_mode<synchronous>, transform_indices = @transform_3, window_bounds = array<i64: 1, 36>}, {pipeline_mode = #tpu.pipeline_mode<synchronous>, transform_indices = @transform_4, window_bounds = array<i64: 1, 72>}, {pipeline_mode = #tpu.pipeline_mode<synchronous>, transform_indices = @transform_5, window_bounds = array<i64: 1, 144>}, {transform_indices = @transform_6, window_bounds = array<i64: 2, 8, 36>}, {transform_indices = @transform_7, window_bounds = array<i64: 2, 8, 72>}, {transform_indices = @transform_8, window_bounds = array<i64: 2, 8, 144>}]} {
    %c0 = arith.constant 0 : index
    %c0_0 = arith.constant 0 : index
    %0 = vector.load %arg2[%c0, %c0_0] : memref<8x8xf32, #tpu.memory_space<vmem>>, vector<8x8xf32>
    %c0_1 = arith.constant 0 : index
    %c0_2 = arith.constant 0 : index
    %1 = vector.load %arg3[%c0_1, %c0_2] : memref<8x1xf32, #tpu.memory_space<vmem>>, vector<8x1xf32>
    %c0_3 = arith.constant 0 : index
    %c0_4 = arith.constant 0 : index
    %c0_5 = arith.constant 0 : index
    %2 = vector.load %arg1[%c0_3, %c0_4, %c0_5] : memref<2x8x144xf32, #tpu.memory_space<vmem>>, vector<1x8x144xf32>
    %3 = vector.shape_cast %2 : vector<1x8x144xf32> to vector<8x144xf32>
    %cst = arith.constant dense<0.000000e+00> : vector<8x144xf32>
    %4 = tpu.matmul %0, %3, %cst {dimension_numbers = #tpu.dot_dimension_numbers<[1], [0], [0], [1], [0, 0, 1, 1], [], []>} : vector<8x8xf32>, vector<8x144xf32>, vector<8x144xf32> -> vector<8x144xf32>
    %5 = vector.broadcast %1 : vector<8x1xf32> to vector<8x144xf32>
    %6 = arith.addf %4, %5 : vector<8x144xf32>
    %cst_6 = arith.constant 0.000000e+00 : f32
    %7 = vector.broadcast %cst_6 : f32 to vector<8x144xf32>
    %8 = arith.maximumf %6, %7 : vector<8x144xf32>
    %c0_7 = arith.constant 0 : index
    %c0_8 = arith.constant 0 : index
    %9 = vector.load %arg4[%c0_7, %c0_8] : memref<1x36xf32, #tpu.memory_space<vmem>>, vector<1x36xf32>
    %10 = vector.extract_strided_slice %8 {offsets = [0, 0], sizes = [8, 27], strides = [1, 1]} : vector<8x144xf32> to vector<8x27xf32>
    %11 = vector.extract_strided_slice %9 {offsets = [0, 0], sizes = [1, 27], strides = [1, 1]} : vector<1x36xf32> to vector<1x27xf32>
    %12 = vector.broadcast %11 : vector<1x27xf32> to vector<8x27xf32>
    %13 = arith.mulf %10, %12 : vector<8x27xf32>
    %c0_9 = arith.constant 0 : index
    %c0_10 = arith.constant 0 : index
    %c0_11 = arith.constant 0 : index
    %14 = vector.load %arg7[%c0_9, %c0_10, %c0_11] : memref<2x8x36xf32, #tpu.memory_space<vmem>>, vector<1x8x27xf32>
    %15 = vector.shape_cast %14 : vector<1x8x27xf32> to vector<8x27xf32>
    %16 = vector.shape_cast %13 : vector<8x27xf32> to vector<1x8x27xf32>
    tpu.vector_store %arg7[%c0_9, %c0_10, %c0_11], %16 {strides = array<i32>} : memref<2x8x36xf32, #tpu.memory_space<vmem>>, vector<1x8x27xf32>,
    %17 = vector.extract_strided_slice %8 {offsets = [0, 135], sizes = [8, 9], strides = [1, 1]} : vector<8x144xf32> to vector<8x9xf32>
    %18 = vector.extract_strided_slice %9 {offsets = [0, 27], sizes = [1, 9], strides = [1, 1]} : vector<1x36xf32> to vector<1x9xf32>
    %19 = vector.broadcast %18 : vector<1x9xf32> to vector<8x9xf32>
    %20 = arith.mulf %17, %19 : vector<8x9xf32>
    %c0_12 = arith.constant 0 : index
    %c0_13 = arith.constant 0 : index
    %c27 = arith.constant 27 : index
    %21 = vector.load %arg7[%c0_12, %c0_13, %c27] : memref<2x8x36xf32, #tpu.memory_space<vmem>>, vector<1x8x9xf32>
    %22 = vector.shape_cast %21 : vector<1x8x9xf32> to vector<8x9xf32>
    %23 = vector.shape_cast %20 : vector<8x9xf32> to vector<1x8x9xf32>
    tpu.vector_store %arg7[%c0_12, %c0_13, %c27], %23 {strides = array<i32>} : memref<2x8x36xf32, #tpu.memory_space<vmem>>, vector<1x8x9xf32>,
    %c0_14 = arith.constant 0 : index
    %c0_15 = arith.constant 0 : index
    %24 = vector.load %arg5[%c0_14, %c0_15] : memref<1x72xf32, #tpu.memory_space<vmem>>, vector<1x72xf32>
    %25 = vector.extract_strided_slice %8 {offsets = [0, 0], sizes = [8, 45], strides = [1, 1]} : vector<8x144xf32> to vector<8x45xf32>
    %26 = vector.extract_strided_slice %24 {offsets = [0, 0], sizes = [1, 45], strides = [1, 1]} : vector<1x72xf32> to vector<1x45xf32>
    %27 = vector.broadcast %26 : vector<1x45xf32> to vector<8x45xf32>
    %28 = arith.mulf %25, %27 : vector<8x45xf32>
    %c0_16 = arith.constant 0 : index
    %c0_17 = arith.constant 0 : index
    %c0_18 = arith.constant 0 : index
    %29 = vector.load %arg8[%c0_16, %c0_17, %c0_18] : memref<2x8x72xf32, #tpu.memory_space<vmem>>, vector<1x8x45xf32>
    %30 = vector.shape_cast %29 : vector<1x8x45xf32> to vector<8x45xf32>
    %31 = vector.shape_cast %28 : vector<8x45xf32> to vector<1x8x45xf32>
    tpu.vector_store %arg8[%c0_16, %c0_17, %c0_18], %31 {strides = array<i32>} : memref<2x8x72xf32, #tpu.memory_space<vmem>>, vector<1x8x45xf32>,
    %32 = vector.extract_strided_slice %8 {offsets = [0, 117], sizes = [8, 27], strides = [1, 1]} : vector<8x144xf32> to vector<8x27xf32>
    %33 = vector.extract_strided_slice %24 {offsets = [0, 45], sizes = [1, 27], strides = [1, 1]} : vector<1x72xf32> to vector<1x27xf32>
    %34 = vector.broadcast %33 : vector<1x27xf32> to vector<8x27xf32>
    %35 = arith.mulf %32, %34 : vector<8x27xf32>
    %c0_19 = arith.constant 0 : index
    %c0_20 = arith.constant 0 : index
    %c45 = arith.constant 45 : index
    %36 = vector.load %arg8[%c0_19, %c0_20, %c45] : memref<2x8x72xf32, #tpu.memory_space<vmem>>, vector<1x8x27xf32>
    %37 = vector.shape_cast %36 : vector<1x8x27xf32> to vector<8x27xf32>
    %38 = vector.shape_cast %35 : vector<8x27xf32> to vector<1x8x27xf32>
    tpu.vector_store %arg8[%c0_19, %c0_20, %c45], %38 {strides = array<i32>} : memref<2x8x72xf32, #tpu.memory_space<vmem>>, vector<1x8x27xf32>,
    %c0_21 = arith.constant 0 : index
    %c0_22 = arith.constant 0 : index
    %39 = vector.load %arg6[%c0_21, %c0_22] : memref<1x144xf32, #tpu.memory_space<vmem>>, vector<1x144xf32>
    %40 = vector.broadcast %39 : vector<1x144xf32> to vector<8x144xf32>
    %41 = arith.mulf %8, %40 : vector<8x144xf32>
    %c0_23 = arith.constant 0 : index
    %c0_24 = arith.constant 0 : index
    %c0_25 = arith.constant 0 : index
    %42 = vector.load %arg9[%c0_23, %c0_24, %c0_25] : memref<2x8x144xf32, #tpu.memory_space<vmem>>, vector<1x8x144xf32>
    %43 = vector.shape_cast %42 : vector<1x8x144xf32> to vector<8x144xf32>
    %44 = vector.shape_cast %41 : vector<8x144xf32> to vector<1x8x144xf32>
    tpu.vector_store %arg9[%c0_23, %c0_24, %c0_25], %44 {strides = array<i32>} : memref<2x8x144xf32, #tpu.memory_space<vmem>>, vector<1x8x144xf32>,
    %c1 = arith.constant 1 : index
    %c0_26 = arith.constant 0 : index
    %c0_27 = arith.constant 0 : index
    %45 = vector.load %arg1[%c1, %c0_26, %c0_27] : memref<2x8x144xf32, #tpu.memory_space<vmem>>, vector<1x8x144xf32>
    %46 = vector.shape_cast %45 : vector<1x8x144xf32> to vector<8x144xf32>
    %cst_28 = arith.constant dense<0.000000e+00> : vector<8x144xf32>
    %47 = tpu.matmul %0, %46, %cst_28 {dimension_numbers = #tpu.dot_dimension_numbers<[1], [0], [0], [1], [0, 0, 1, 1], [], []>} : vector<8x8xf32>, vector<8x144xf32>, vector<8x144xf32> -> vector<8x144xf32>
    %48 = vector.broadcast %1 : vector<8x1xf32> to vector<8x144xf32>
    %49 = arith.addf %47, %48 : vector<8x144xf32>
    %cst_29 = arith.constant 0.000000e+00 : f32
    %50 = vector.broadcast %cst_29 : f32 to vector<8x144xf32>
    %51 = arith.maximumf %49, %50 : vector<8x144xf32>
    %c0_30 = arith.constant 0 : index
    %c0_31 = arith.constant 0 : index
    %52 = vector.load %arg4[%c0_30, %c0_31] : memref<1x36xf32, #tpu.memory_space<vmem>>, vector<1x36xf32>
    %53 = vector.extract_strided_slice %51 {offsets = [0, 0], sizes = [8, 27], strides = [1, 1]} : vector<8x144xf32> to vector<8x27xf32>
    %54 = vector.extract_strided_slice %52 {offsets = [0, 0], sizes = [1, 27], strides = [1, 1]} : vector<1x36xf32> to vector<1x27xf32>
    %55 = vector.broadcast %54 : vector<1x27xf32> to vector<8x27xf32>
    %56 = arith.mulf %53, %55 : vector<8x27xf32>
    %c1_32 = arith.constant 1 : index
    %c0_33 = arith.constant 0 : index
    %c0_34 = arith.constant 0 : index
    %57 = vector.load %arg7[%c1_32, %c0_33, %c0_34] : memref<2x8x36xf32, #tpu.memory_space<vmem>>, vector<1x8x27xf32>
    %58 = vector.shape_cast %57 : vector<1x8x27xf32> to vector<8x27xf32>
    %59 = vector.shape_cast %56 : vector<8x27xf32> to vector<1x8x27xf32>
    tpu.vector_store %arg7[%c1_32, %c0_33, %c0_34], %59 {strides = array<i32>} : memref<2x8x36xf32, #tpu.memory_space<vmem>>, vector<1x8x27xf32>,
    %60 = vector.extract_strided_slice %51 {offsets = [0, 135], sizes = [8, 9], strides = [1, 1]} : vector<8x144xf32> to vector<8x9xf32>
    %61 = vector.extract_strided_slice %52 {offsets = [0, 27], sizes = [1, 9], strides = [1, 1]} : vector<1x36xf32> to vector<1x9xf32>
    %62 = vector.broadcast %61 : vector<1x9xf32> to vector<8x9xf32>
    %63 = arith.mulf %60, %62 : vector<8x9xf32>
    %c1_35 = arith.constant 1 : index
    %c0_36 = arith.constant 0 : index
    %c27_37 = arith.constant 27 : index
    %64 = vector.load %arg7[%c1_35, %c0_36, %c27_37] : memref<2x8x36xf32, #tpu.memory_space<vmem>>, vector<1x8x9xf32>
    %65 = vector.shape_cast %64 : vector<1x8x9xf32> to vector<8x9xf32>
    %66 = vector.shape_cast %63 : vector<8x9xf32> to vector<1x8x9xf32>
    tpu.vector_store %arg7[%c1_35, %c0_36, %c27_37], %66 {strides = array<i32>} : memref<2x8x36xf32, #tpu.memory_space<vmem>>, vector<1x8x9xf32>,
    %c0_38 = arith.constant 0 : index
    %c0_39 = arith.constant 0 : index
    %67 = vector.load %arg5[%c0_38, %c0_39] : memref<1x72xf32, #tpu.memory_space<vmem>>, vector<1x72xf32>
    %68 = vector.extract_strided_slice %51 {offsets = [0, 0], sizes = [8, 45], strides = [1, 1]} : vector<8x144xf32> to vector<8x45xf32>
    %69 = vector.extract_strided_slice %67 {offsets = [0, 0], sizes = [1, 45], strides = [1, 1]} : vector<1x72xf32> to vector<1x45xf32>
    %70 = vector.broadcast %69 : vector<1x45xf32> to vector<8x45xf32>
    %71 = arith.mulf %68, %70 : vector<8x45xf32>
    %c1_40 = arith.constant 1 : index
    %c0_41 = arith.constant 0 : index
    %c0_42 = arith.constant 0 : index
    %72 = vector.load %arg8[%c1_40, %c0_41, %c0_42] : memref<2x8x72xf32, #tpu.memory_space<vmem>>, vector<1x8x45xf32>
    %73 = vector.shape_cast %72 : vector<1x8x45xf32> to vector<8x45xf32>
    %74 = vector.shape_cast %71 : vector<8x45xf32> to vector<1x8x45xf32>
    tpu.vector_store %arg8[%c1_40, %c0_41, %c0_42], %74 {strides = array<i32>} : memref<2x8x72xf32, #tpu.memory_space<vmem>>, vector<1x8x45xf32>,
    %75 = vector.extract_strided_slice %51 {offsets = [0, 117], sizes = [8, 27], strides = [1, 1]} : vector<8x144xf32> to vector<8x27xf32>
    %76 = vector.extract_strided_slice %67 {offsets = [0, 45], sizes = [1, 27], strides = [1, 1]} : vector<1x72xf32> to vector<1x27xf32>
    %77 = vector.broadcast %76 : vector<1x27xf32> to vector<8x27xf32>
    %78 = arith.mulf %75, %77 : vector<8x27xf32>
    %c1_43 = arith.constant 1 : index
    %c0_44 = arith.constant 0 : index
    %c45_45 = arith.constant 45 : index
    %79 = vector.load %arg8[%c1_43, %c0_44, %c45_45] : memref<2x8x72xf32, #tpu.memory_space<vmem>>, vector<1x8x27xf32>
    %80 = vector.shape_cast %79 : vector<1x8x27xf32> to vector<8x27xf32>
    %81 = vector.shape_cast %78 : vector<8x27xf32> to vector<1x8x27xf32>
    tpu.vector_store %arg8[%c1_43, %c0_44, %c45_45], %81 {strides = array<i32>} : memref<2x8x72xf32, #tpu.memory_space<vmem>>, vector<1x8x27xf32>,
    %c0_46 = arith.constant 0 : index
    %c0_47 = arith.constant 0 : index
    %82 = vector.load %arg6[%c0_46, %c0_47] : memref<1x144xf32, #tpu.memory_space<vmem>>, vector<1x144xf32>
    %83 = vector.broadcast %82 : vector<1x144xf32> to vector<8x144xf32>
    %84 = arith.mulf %51, %83 : vector<8x144xf32>
    %c1_48 = arith.constant 1 : index
    %c0_49 = arith.constant 0 : index
    %c0_50 = arith.constant 0 : index
    %85 = vector.load %arg9[%c1_48, %c0_49, %c0_50] : memref<2x8x144xf32, #tpu.memory_space<vmem>>, vector<1x8x144xf32>
    %86 = vector.shape_cast %85 : vector<1x8x144xf32> to vector<8x144xf32>
    %87 = vector.shape_cast %84 : vector<8x144xf32> to vector<1x8x144xf32>
    tpu.vector_store %arg9[%c1_48, %c0_49, %c0_50], %87 {strides = array<i32>} : memref<2x8x144xf32, #tpu.memory_space<vmem>>, vector<1x8x144xf32>,
    return
  }
  func.func @transform_0(%arg0: i32) -> (i32, i32, i32) {
    %c0_i32 = arith.constant 0 : i32
    %c0_i32_0 = arith.constant 0 : i32
    %c0_i32_1 = arith.constant 0 : i32
    return %arg0, %c0_i32, %c0_i32_0 : i32, i32, i32
  }
  func.func @transform_1(%arg0: i32) -> (i32, i32) {
    %c0_i32 = arith.constant 0 : i32
    %c0_i32_0 = arith.constant 0 : i32
    %c0_i32_1 = arith.constant 0 : i32
    return %c0_i32, %c0_i32_0 : i32, i32
  }
  func.func @transform_2(%arg0: i32) -> (i32, i32) {
    %c0_i32 = arith.constant 0 : i32
    %c0_i32_0 = arith.constant 0 : i32
    %c0_i32_1 = arith.constant 0 : i32
    return %c0_i32, %c0_i32_0 : i32, i32
  }
  func.func @transform_3(%arg0: i32) -> (i32, i32) {
    %c0_i32 = arith.constant 0 : i32
    %c0_i32_0 = arith.constant 0 : i32
    %c0_i32_1 = arith.constant 0 : i32
    return %c0_i32, %c0_i32_0 : i32, i32
  }
  func.func @transform_4(%arg0: i32) -> (i32, i32) {
    %c0_i32 = arith.constant 0 : i32
    %c0_i32_0 = arith.constant 0 : i32
    %c0_i32_1 = arith.constant 0 : i32
    return %c0_i32, %c0_i32_0 : i32, i32
  }
  func.func @transform_5(%arg0: i32) -> (i32, i32) {
    %c0_i32 = arith.constant 0 : i32
    %c0_i32_0 = arith.constant 0 : i32
    %c0_i32_1 = arith.constant 0 : i32
    return %c0_i32, %c0_i32_0 : i32, i32
  }
  func.func @transform_6(%arg0: i32) -> (i32, i32, i32) {
    %c0_i32 = arith.constant 0 : i32
    %c0_i32_0 = arith.constant 0 : i32
    %c0_i32_1 = arith.constant 0 : i32
    return %arg0, %c0_i32, %c0_i32_0 : i32, i32, i32
  }
  func.func @transform_7(%arg0: i32) -> (i32, i32, i32) {
    %c0_i32 = arith.constant 0 : i32
    %c0_i32_0 = arith.constant 0 : i32
    %c0_i32_1 = arith.constant 0 : i32
    return %arg0, %c0_i32, %c0_i32_0 : i32, i32, i32
  }
  func.func @transform_8(%arg0: i32) -> (i32, i32, i32) {
    %c0_i32 = arith.constant 0 : i32
    %c0_i32_0 = arith.constant 0 : i32
    %c0_i32_1 = arith.constant 0 : i32
    return %arg0, %c0_i32, %c0_i32_0 : i32, i32, i32
  }
}

</mosaic_0001>

<llo_original>
// kernel: reverse.2
$region0: #{reverse.2}
  %s0 = inlined_call_operand.vmem [shape: f32[2,4,16,7], index: 0, kind: input, shape index: {}]
  %s1 = inlined_call_operand.vmem [shape: f32[2,4,16,7], index: 1, kind: output, shape index: {}]
  $region1: #{reverse.2} parent=0
    #allocation0 [shape = 'u8[65536]{0}', space=vmem, size = 0x10000, scoped, tag = 'operand span for operand 0']
    #allocation1 [shape = 'u8[32768]{0}', space=vmem, size = 0x8000, scoped, tag = 'operand span for operand 1']
    %s2 = scalar_lea.vmem [#allocation0], 8
    // Predicated region
    $region2: #{reverse.2} parent=1 // pred_check
      _
    $region3: #{reverse.2} parent=1 // pred_check_branch
      %4 = sbr.rel (0) target = $region5
    $region4: #{reverse.2} parent=1 // pred_region
      // Predicated region
      $region6: #{reverse.2} parent=4 // pred_check
        _
      $region7: #{reverse.2} parent=4 // pred_check_branch
        %6 = sbr.rel (0) target = $region9
      $region8: #{reverse.2} parent=4 // pred_region
        // Predicated region
        $region21: #{reverse.2} parent=8 // pred_check
          _
        $region22: #{reverse.2} parent=8 // pred_check_branch
          %36 = sbr.rel (0) target = $region24
        $region23: #{reverse.2} parent=8 // pred_region
          loop: start=0, step=1, limit=1
          $region25: #{reverse.2} parent=23 // loop_pre_header
            _
          $region26: #{reverse.2} parent=23 // loop_header
            %s38 = sphi 0, %s42
            %p39 = scmp.ge.s32.totalorder %s38, 1
            %s43 = sphi %s0, %s0
            %s44 = sphi %s2, %s2
          $region27: #{reverse.2} parent=23 // loop_header_branch
            %41 = sbr.rel (%p39) target = $region31
          $region28: #{reverse.2} parent=23 // loop_body
            %v45 = vld [vmem:[%s43] sm:$0xff]
            %46 = vst [vmem:[%s44] sm:$0xff] %v45
            %v47 = vld [vmem:[%s43 + $0x8] sm:$0xff]
            %48 = vst [vmem:[%s44 + $0x10] sm:$0xff] %v47
            %v49 = vld [vmem:[%s43 + $0x10] sm:$0xff]
            %50 = vst [vmem:[%s44 + $0x20] sm:$0xff] %v49
            %v51 = vld [vmem:[%s43 + $0x18] sm:$0xff]
            %52 = vst [vmem:[%s44 + $0x30] sm:$0xff] %v51
            %v53 = vld [vmem:[%s43 + $0x20] sm:$0xff]
            %54 = vst [vmem:[%s44 + $0x40] sm:$0xff] %v53
            %v55 = vld [vmem:[%s43 + $0x28] sm:$0xff]
            %56 = vst [vmem:[%s44 + $0x50] sm:$0xff] %v55
            %v57 = vld [vmem:[%s43 + $0x30] sm:$0xff]
            %58 = vst [vmem:[%s44 + $0x60] sm:$0xff] %v57
            %v59 = vld [vmem:[%s43 + $0x38] sm:$0xff]
            %60 = vst [vmem:[%s44 + $0x70] sm:$0xff] %v59
          $region29: #{reverse.2} parent=23 // loop_footer
            %s42 = sadd.s32 1, %s38
          $region30: #{reverse.2} parent=23 // loop_footer_branch
            %37 = sbr.rel target = $region26
          $region31: #{reverse.2} parent=23 // loop_exit
            _
        $region24: #{reverse.2} parent=8 // pred_fallthru
          _
        // Predicated region
        $region32: #{reverse.2} parent=8 // pred_check
          _
        $region33: #{reverse.2} parent=8 // pred_check_branch
          %62 = sbr.rel target = $region35
        $region34: #{reverse.2} parent=8 // pred_region
          _
        $region35: #{reverse.2} parent=8 // pred_fallthru
          _
      $region9: #{reverse.2} parent=4 // pred_fallthru
        _
      // Predicated region
      $region10: #{reverse.2} parent=4 // pred_check
        _
      $region11: #{reverse.2} parent=4 // pred_check_branch
        %8 = sbr.rel target = $region13
      $region12: #{reverse.2} parent=4 // pred_region
        %s10 = ssub.s32 256, 1
        loop: start=0, step=1, limit=1
        $region14: #{reverse.2} parent=12 // loop_pre_header
          _
        $region15: #{reverse.2} parent=12 // loop_header
          %s12 = sphi 0, %s16
          %p13 = scmp.ge.s32.totalorder %s12, 1
          %s17 = sphi %s0, %s0
          %s18 = sphi %s2, %s2
        $region16: #{reverse.2} parent=12 // loop_header_branch
          %15 = sbr.rel (%p13) target = $region20
        $region17: #{reverse.2} parent=12 // loop_body
          %v19 = vld [vmem:[%s17] sm:%s10]
          %20 = vst [vmem:[%s18] sm:%s10] %v19
          %v21 = vld [vmem:[%s17 + $0x8] sm:%s10]
          %22 = vst [vmem:[%s18 + $0x10] sm:%s10] %v21
          %v23 = vld [vmem:[%s17 + $0x10] sm:%s10]
          %24 = vst [vmem:[%s18 + $0x20] sm:%s10] %v23
          %v25 = vld [vmem:[%s17 + $0x18] sm:%s10]
          %26 = vst [vmem:[%s18 + $0x30] sm:%s10] %v25
          %v27 = vld [vmem:[%s17 + $0x20] sm:%s10]
          %28 = vst [vmem:[%s18 + $0x40] sm:%s10] %v27
          %v29 = vld [vmem:[%s17 + $0x28] sm:%s10]
          %30 = vst [vmem:[%s18 + $0x50] sm:%s10] %v29
          %v31 = vld [vmem:[%s17 + $0x30] sm:%s10]
          %32 = vst [vmem:[%s18 + $0x60] sm:%s10] %v31
          %v33 = vld [vmem:[%s17 + $0x38] sm:%s10]
          %34 = vst [vmem:[%s18 + $0x70] sm:%s10] %v33
        $region18: #{reverse.2} parent=12 // loop_footer
          %s16 = sadd.s32 1, %s12
        $region19: #{reverse.2} parent=12 // loop_footer_branch
          %11 = sbr.rel target = $region15
        $region20: #{reverse.2} parent=12 // loop_exit
          _
      $region13: #{reverse.2} parent=4 // pred_fallthru
        _
    $region5: #{reverse.2} parent=1 // pred_fallthru
      _
    %63 = vnop
    %s64 = scalar_lea.vmem [#allocation0], 7
    %v65 = vld [vmem:[%s64] ss:$-1 sm:$0xff]
    %v66 = vrot.slane %v65, 1
    %67 = vst [vmem:[#allocation1] sm:$0xff] %v66
    %s68 = scalar_lea.vmem [#allocation0], 8
    %s69 = scalar_lea.vmem %s68, 7 [#allocation0]
    %v70 = vld [vmem:[%s69] ss:$-1 sm:$0xff]
    %v71 = vrot.slane %v70, 1
    %v72 = vlaneseq
    %v73 = vshrl.u32 %v72, 7
    %vm74 = vcmp.lt.s32.totalorder %v73, 7
    %75 = vst.msk [vmem:[#allocation1] sm:$0xff] %vm74, %v71
    %s76 = scalar_lea.vmem [#allocation1], 8
    %s77 = scalar_lea.vmem [#allocation0], 16
    %s78 = scalar_lea.vmem %s77, 7 [#allocation0]
    %v79 = vld [vmem:[%s78] ss:$-1 sm:$0xff]
    %v80 = vrot.slane %v79, 1
    %81 = vst [vmem:[%s76] sm:$0xff] %v80
    %s82 = scalar_lea.vmem %s77, 8 [#allocation0]
    %s83 = scalar_lea.vmem %s82, 7 [#allocation0]
    %v84 = vld [vmem:[%s83] ss:$-1 sm:$0xff]
    %v85 = vrot.slane %v84, 1
    %v86 = vlaneseq
    %v87 = vshrl.u32 %v86, 7
    %vm88 = vcmp.lt.s32.totalorder %v87, 7
    %89 = vst.msk [vmem:[%s76] sm:$0xff] %vm88, %v85
    %s90 = scalar_lea.vmem [#allocation1], 16
    %s91 = scalar_lea.vmem [#allocation0], 32
    %s92 = scalar_lea.vmem %s91, 7 [#allocation0]
    %v93 = vld [vmem:[%s92] ss:$-1 sm:$0xff]
    %v94 = vrot.slane %v93, 1
    %95 = vst [vmem:[%s90] sm:$0xff] %v94
    %s96 = scalar_lea.vmem %s91, 8 [#allocation0]
    %s97 = scalar_lea.vmem %s96, 7 [#allocation0]
    %v98 = vld [vmem:[%s97] ss:$-1 sm:$0xff]
    %v99 = vrot.slane %v98, 1
    %v100 = vlaneseq
    %v101 = vshrl.u32 %v100, 7
    %vm102 = vcmp.lt.s32.totalorder %v101, 7
    %103 = vst.msk [vmem:[%s90] sm:$0xff] %vm102, %v99
    %s104 = scalar_lea.vmem [#allocation1], 24
    %s105 = scalar_lea.vmem [#allocation0], 48
    %s106 = scalar_lea.vmem %s105, 7 [#allocation0]
    %v107 = vld [vmem:[%s106] ss:$-1 sm:$0xff]
    %v108 = vrot.slane %v107, 1
    %109 = vst [vmem:[%s104] sm:$0xff] %v108
    %s110 = scalar_lea.vmem %s105, 8 [#allocation0]
    %s111 = scalar_lea.vmem %s110, 7 [#allocation0]
    %v112 = vld [vmem:[%s111] ss:$-1 sm:$0xff]
    %v113 = vrot.slane %v112, 1
    %v114 = vlaneseq
    %v115 = vshrl.u32 %v114, 7
    %vm116 = vcmp.lt.s32.totalorder %v115, 7
    %117 = vst.msk [vmem:[%s104] sm:$0xff] %vm116, %v113
    %s118 = scalar_lea.vmem [#allocation1], 32
    %s119 = scalar_lea.vmem [#allocation0], 64
    %s120 = scalar_lea.vmem %s119, 7 [#allocation0]
    %v121 = vld [vmem:[%s120] ss:$-1 sm:$0xff]
    %v122 = vrot.slane %v121, 1
    %123 = vst [vmem:[%s118] sm:$0xff] %v122
    %s124 = scalar_lea.vmem %s119, 8 [#allocation0]
    %s125 = scalar_lea.vmem %s124, 7 [#allocation0]
    %v126 = vld [vmem:[%s125] ss:$-1 sm:$0xff]
    %v127 = vrot.slane %v126, 1
    %v128 = vlaneseq
    %v129 = vshrl.u32 %v128, 7
    %vm130 = vcmp.lt.s32.totalorder %v129, 7
    %131 = vst.msk [vmem:[%s118] sm:$0xff] %vm130, %v127
    %s132 = scalar_lea.vmem [#allocation1], 40
    %s133 = scalar_lea.vmem [#allocation0], 80
    %s134 = scalar_lea.vmem %s133, 7 [#allocation0]
    %v135 = vld [vmem:[%s134] ss:$-1 sm:$0xff]
    %v136 = vrot.slane %v135, 1
    %137 = vst [vmem:[%s132] sm:$0xff] %v136
    %s138 = scalar_lea.vmem %s133, 8 [#allocation0]
    %s139 = scalar_lea.vmem %s138, 7 [#allocation0]
    %v140 = vld [vmem:[%s139] ss:$-1 sm:$0xff]
    %v141 = vrot.slane %v140, 1
    %v142 = vlaneseq
    %v143 = vshrl.u32 %v142, 7
    %vm144 = vcmp.lt.s32.totalorder %v143, 7
    %145 = vst.msk [vmem:[%s132] sm:$0xff] %vm144, %v141
    %s146 = scalar_lea.vmem [#allocation1], 48
    %s147 = scalar_lea.vmem [#allocation0], 96
    %s148 = scalar_lea.vmem %s147, 7 [#allocation0]
    %v149 = vld [vmem:[%s148] ss:$-1 sm:$0xff]
    %v150 = vrot.slane %v149, 1
    %151 = vst [vmem:[%s146] sm:$0xff] %v150
    %s152 = scalar_lea.vmem %s147, 8 [#allocation0]
    %s153 = scalar_lea.vmem %s152, 7 [#allocation0]
    %v154 = vld [vmem:[%s153] ss:$-1 sm:$0xff]
    %v155 = vrot.slane %v154, 1
    %v156 = vlaneseq
    %v157 = vshrl.u32 %v156, 7
    %vm158 = vcmp.lt.s32.totalorder %v157, 7
    %159 = vst.msk [vmem:[%s146] sm:$0xff] %vm158, %v155
    %s160 = scalar_lea.vmem [#allocation1], 56
    %s161 = scalar_lea.vmem [#allocation0], 112
    %s162 = scalar_lea.vmem %s161, 7 [#allocation0]
    %v163 = vld [vmem:[%s162] ss:$-1 sm:$0xff]
    %v164 = vrot.slane %v163, 1
    %165 = vst [vmem:[%s160] sm:$0xff] %v164
    %s166 = scalar_lea.vmem %s161, 8 [#allocation0]
    %s167 = scalar_lea.vmem %s166, 7 [#allocation0]
    %v168 = vld [vmem:[%s167] ss:$-1 sm:$0xff]
    %v169 = vrot.slane %v168, 1
    %v170 = vlaneseq
    %v171 = vshrl.u32 %v170, 7
    %vm172 = vcmp.lt.s32.totalorder %v171, 7
    %173 = vst.msk [vmem:[%s160] sm:$0xff] %vm172, %v169
    // Predicated region
    $region36: #{reverse.2} parent=1 // pred_check
      _
    $region37: #{reverse.2} parent=1 // pred_check_branch
      %175 = sbr.rel (0) target = $region39
    $region38: #{reverse.2} parent=1 // pred_region
      // Predicated region
      $region40: #{reverse.2} parent=38 // pred_check
        _
      $region41: #{reverse.2} parent=38 // pred_check_branch
        %177 = sbr.rel (0) target = $region43
      $region42: #{reverse.2} parent=38 // pred_region
        // Predicated region
        $region55: #{reverse.2} parent=42 // pred_check
          _
        $region56: #{reverse.2} parent=42 // pred_check_branch
          %207 = sbr.rel (0) target = $region58
        $region57: #{reverse.2} parent=42 // pred_region
          loop: start=0, step=1, limit=1
          $region59: #{reverse.2} parent=57 // loop_pre_header
            _
          $region60: #{reverse.2} parent=57 // loop_header
            %s209 = sphi 0, %s213
            %p210 = scmp.ge.s32.totalorder %s209, 1
            %s214 = sphi [#allocation1], [#allocation1]
            %s215 = sphi %s1, %s1
          $region61: #{reverse.2} parent=57 // loop_header_branch
            %212 = sbr.rel (%p210) target = $region65
          $region62: #{reverse.2} parent=57 // loop_body
            %v216 = vld [vmem:[%s214] sm:$0xff]
            %217 = vst [vmem:[%s215] sm:$0xff] %v216
            %v218 = vld [vmem:[%s214 + $0x8] sm:$0xff]
            %219 = vst [vmem:[%s215 + $0x8] sm:$0xff] %v218
            %v220 = vld [vmem:[%s214 + $0x10] sm:$0xff]
            %221 = vst [vmem:[%s215 + $0x10] sm:$0xff] %v220
            %v222 = vld [vmem:[%s214 + $0x18] sm:$0xff]
            %223 = vst [vmem:[%s215 + $0x18] sm:$0xff] %v222
            %v224 = vld [vmem:[%s214 + $0x20] sm:$0xff]
            %225 = vst [vmem:[%s215 + $0x20] sm:$0xff] %v224
            %v226 = vld [vmem:[%s214 + $0x28] sm:$0xff]
            %227 = vst [vmem:[%s215 + $0x28] sm:$0xff] %v226
            %v228 = vld [vmem:[%s214 + $0x30] sm:$0xff]
            %229 = vst [vmem:[%s215 + $0x30] sm:$0xff] %v228
            %v230 = vld [vmem:[%s214 + $0x38] sm:$0xff]
            %231 = vst [vmem:[%s215 + $0x38] sm:$0xff] %v230
          $region63: #{reverse.2} parent=57 // loop_footer
            %s213 = sadd.s32 1, %s209
          $region64: #{reverse.2} parent=57 // loop_footer_branch
            %208 = sbr.rel target = $region60
          $region65: #{reverse.2} parent=57 // loop_exit
            _
        $region58: #{reverse.2} parent=42 // pred_fallthru
          _
        // Predicated region
        $region66: #{reverse.2} parent=42 // pred_check
          _
        $region67: #{reverse.2} parent=42 // pred_check_branch
          %233 = sbr.rel target = $region69
        $region68: #{reverse.2} parent=42 // pred_region
          _
        $region69: #{reverse.2} parent=42 // pred_fallthru
          _
      $region43: #{reverse.2} parent=38 // pred_fallthru
        _
      // Predicated region
      $region44: #{reverse.2} parent=38 // pred_check
        _
      $region45: #{reverse.2} parent=38 // pred_check_branch
        %179 = sbr.rel target = $region47
      $region46: #{reverse.2} parent=38 // pred_region
        %s181 = ssub.s32 256, 1
        loop: start=0, step=1, limit=1
        $region48: #{reverse.2} parent=46 // loop_pre_header
          _
        $region49: #{reverse.2} parent=46 // loop_header
          %s183 = sphi 0, %s187
          %p184 = scmp.ge.s32.totalorder %s183, 1
          %s188 = sphi [#allocation1], [#allocation1]
          %s189 = sphi %s1, %s1
        $region50: #{reverse.2} parent=46 // loop_header_branch
          %186 = sbr.rel (%p184) target = $region54
        $region51: #{reverse.2} parent=46 // loop_body
          %v190 = vld [vmem:[%s188] sm:%s181]
          %191 = vst [vmem:[%s189] sm:%s181] %v190
          %v192 = vld [vmem:[%s188 + $0x8] sm:%s181]
          %193 = vst [vmem:[%s189 + $0x8] sm:%s181] %v192
          %v194 = vld [vmem:[%s188 + $0x10] sm:%s181]
          %195 = vst [vmem:[%s189 + $0x10] sm:%s181] %v194
          %v196 = vld [vmem:[%s188 + $0x18] sm:%s181]
          %197 = vst [vmem:[%s189 + $0x18] sm:%s181] %v196
          %v198 = vld [vmem:[%s188 + $0x20] sm:%s181]
          %199 = vst [vmem:[%s189 + $0x20] sm:%s181] %v198
          %v200 = vld [vmem:[%s188 + $0x28] sm:%s181]
          %201 = vst [vmem:[%s189 + $0x28] sm:%s181] %v200
          %v202 = vld [vmem:[%s188 + $0x30] sm:%s181]
          %203 = vst [vmem:[%s189 + $0x30] sm:%s181] %v202
          %v204 = vld [vmem:[%s188 + $0x38] sm:%s181]
          %205 = vst [vmem:[%s189 + $0x38] sm:%s181] %v204
        $region52: #{reverse.2} parent=46 // loop_footer
          %s187 = sadd.s32 1, %s183
        $region53: #{reverse.2} parent=46 // loop_footer_branch
          %182 = sbr.rel target = $region49
        $region54: #{reverse.2} parent=46 // loop_exit
          _
      $region47: #{reverse.2} parent=38 // pred_fallthru
        _
    $region39: #{reverse.2} parent=1 // pred_fallthru
      _
    %234 = vnop

// kernel: shu_org_forward.1
$region0: #{shu_org_forward.1}
  #allocation0 [shape = 'u32[]', space=smem, size = 0x4, offset = 0x4, fixed_abs, tag = 'smem constant byte address 0x4 - core index']
  #allocation1 [shape = 'u32[144,128]{1,0:T(1,128)}', space=vmem, size = 0x12000, scoped, tag = 'internal scratch']
  %s0 = inlined_call_operand.vmem [shape: f32[2,8,144], index: 0, kind: input, shape index: {}]
  %s1 = inlined_call_operand.vmem [shape: f32[8,8], index: 1, kind: input, shape index: {}]
  %s2 = inlined_call_operand.vmem [shape: f32[8,1], index: 2, kind: input, shape index: {}]
  %s3 = inlined_call_operand.vmem [shape: f32[1,36], index: 3, kind: input, shape index: {}]
  %s4 = inlined_call_operand.vmem [shape: f32[1,72], index: 4, kind: input, shape index: {}]
  %s5 = inlined_call_operand.vmem [shape: f32[1,144], index: 5, kind: input, shape index: {}]
  %s6 = inlined_call_operand.vmem [shape: f32[2,8,36], index: 6, kind: output, shape index: {0}]
  %s7 = inlined_call_operand.vmem [shape: f32[2,8,72], index: 7, kind: output, shape index: {1}]
  %s8 = inlined_call_operand.vmem [shape: f32[2,8,144], index: 8, kind: output, shape index: {2}]
  %9 = xla_tuple %s6, %s7, %s8
  %s10 = sld [smem:[#allocation0]]
  $region50: #{shu_org_forward.1} parent=0
    _
  %s12 = ssub.s32 1, %s10
  %s13 = scalar_select 0, %s12, %s10
  // Predicated region
  $region2: #{shu_org_forward.1} parent=0 // pred_check
    _
  $region3: #{shu_org_forward.1} parent=0 // pred_check_branch
    %15 = sbr.rel (0) target = $region5
  $region4: #{shu_org_forward.1} parent=0 // pred_region
    _
  $region5: #{shu_org_forward.1} parent=0 // pred_fallthru
    _
  // Predicated region
  $region6: #{shu_org_forward.1} parent=0 // pred_check
    _
  $region7: #{shu_org_forward.1} parent=0 // pred_check_branch
    %17 = sbr.rel (0) target = $region9
  $region8: #{shu_org_forward.1} parent=0 // pred_region
    _
  $region9: #{shu_org_forward.1} parent=0 // pred_fallthru
    _
  // Predicated region
  $region10: #{shu_org_forward.1} parent=0 // pred_check
    _
  $region11: #{shu_org_forward.1} parent=0 // pred_check_branch
    %19 = sbr.rel (0) target = $region13
  $region12: #{shu_org_forward.1} parent=0 // pred_region
    _
  $region13: #{shu_org_forward.1} parent=0 // pred_fallthru
    _
  // Predicated region
  $region14: #{shu_org_forward.1} parent=0 // pred_check
    _
  $region15: #{shu_org_forward.1} parent=0 // pred_check_branch
    %21 = sbr.rel (0) target = $region17
  $region16: #{shu_org_forward.1} parent=0 // pred_region
    _
  $region17: #{shu_org_forward.1} parent=0 // pred_fallthru
    _
  // Predicated region
  $region18: #{shu_org_forward.1} parent=0 // pred_check
    _
  $region19: #{shu_org_forward.1} parent=0 // pred_check_branch
    %23 = sbr.rel (0) target = $region21
  $region20: #{shu_org_forward.1} parent=0 // pred_region
    _
  $region21: #{shu_org_forward.1} parent=0 // pred_fallthru
    _
  // Predicated region
  $region22: #{shu_org_forward.1} parent=0 // pred_check
    _
  $region23: #{shu_org_forward.1} parent=0 // pred_check_branch
    %25 = sbr.rel (0) target = $region25
  $region24: #{shu_org_forward.1} parent=0 // pred_region
    _
  $region25: #{shu_org_forward.1} parent=0 // pred_fallthru
    _
  %v26 = vld [vmem:[%s1] sm:$0xff]
  %v27 = vld [vmem:[%s2] sm:$0xff]
  %v28 = vld [vmem:[%s0] sm:$0xff]
  %v29 = vld [vmem:[%s0 + $0x8] sm:$0xff]
  %31 = vset.pattern.permute.xlu0 0
  %32 = vperm.xlu0 %31, %v27
  %v33 = vpop.permute.xlu0 %32
  %vm35 = vcmask 64512
  %v37 = vsel %vm35, %v26, 0
  %39 = vmatprep.subr.mxu0 0.0
  %40 = vmatpush1.msra.mxu0 0.0
  %41 = vmatprep.subr.mxu0 0.0
  %42 = vmatpush1.msra.mxu0 0.0
  %43 = vmatprep.subr.mxu0 0.0
  %44 = vmatpush1.msra.mxu0 0.0
  %45 = vmatprep.subr.mxu0 0.0
  %46 = vmatpush1.msra.mxu0 0.0
  %47 = vmatprep.subr.mxu0 0.0
  %48 = vmatpush1.msra.mxu0 0.0
  %49 = vmatprep.subr.mxu0 0.0
  %50 = vmatpush1.msra.mxu0 0.0
  %51 = vmatprep.subr.mxu0 0.0
  %52 = vmatpush1.msra.mxu0 0.0
  %53 = vmatprep.subr.mxu0 0.0
  %54 = vmatpush1.msra.mxu0 0.0
  %55 = vmatprep.subr.mxu0 0.0
  %56 = vmatpush1.msra.mxu0 0.0
  %57 = vmatprep.subr.mxu0 0.0
  %58 = vmatpush1.msra.mxu0 0.0
  %59 = vmatprep.subr.mxu0 0.0
  %60 = vmatpush1.msra.mxu0 0.0
  %61 = vmatprep.subr.mxu0 0.0
  %62 = vmatpush1.msra.mxu0 0.0
  %63 = vmatprep.subr.mxu0 0.0
  %64 = vmatpush1.msra.mxu0 0.0
  %65 = vmatprep.subr.mxu0 0.0
  %66 = vmatpush1.msra.mxu0 0.0
  %67 = vmatprep.subr.mxu0 0.0
  %68 = vmatpush1.msra.mxu0 0.0
  %69 = vmatprep.subr.mxu0 %v29
  %70 = vmatpush1.msra.mxu0 %v28
  %71 = vmatprep.subr.mxu0 0.0
  %72 = vmatpush2.msra.mxu0 0.0
  %73 = vmatprep.subr.mxu0 0.0
  %74 = vmatpush2.msra.mxu0 0.0
  %75 = vmatprep.subr.mxu0 0.0
  %76 = vmatpush2.msra.mxu0 0.0
  %77 = vmatprep.subr.mxu0 0.0
  %78 = vmatpush2.msra.mxu0 0.0
  %79 = vmatprep.subr.mxu0 0.0
  %80 = vmatpush2.msra.mxu0 0.0
  %81 = vmatprep.subr.mxu0 0.0
  %82 = vmatpush2.msra.mxu0 0.0
  %83 = vmatprep.subr.mxu0 0.0
  %84 = vmatpush2.msra.mxu0 0.0
  %85 = vmatprep.subr.mxu0 0.0
  %86 = vmatpush2.msra.mxu0 0.0
  %87 = vmatprep.subr.mxu0 0.0
  %88 = vmatpush2.msra.mxu0 0.0
  %89 = vmatprep.subr.mxu0 0.0
  %90 = vmatpush2.msra.mxu0 0.0
  %91 = vmatprep.subr.mxu0 0.0
  %92 = vmatpush2.msra.mxu0 0.0
  %93 = vmatprep.subr.mxu0 0.0
  %94 = vmatpush2.msra.mxu0 0.0
  %95 = vmatprep.subr.mxu0 0.0
  %96 = vmatpush2.msra.mxu0 0.0
  %97 = vmatprep.subr.mxu0 0.0
  %98 = vmatpush2.msra.mxu0 0.0
  %99 = vmatprep.subr.mxu0 0.0
  %100 = vmatpush2.msra.mxu0 0.0
  %101 = vmatprep.subr.mxu0 0.0
  %102 = vmatpush2.msra.mxu0 0.0
  %103 = vmatprep.mubr.f32.mxu0 0.0
  %104 = vmatmul.mubr.f32.gmra.mxu0 %v37
  %v105 = vpop.f32.mrf.mxu0
  %v106 = vadd.f32 %v33, %v105
  %v107 = vpop.f32.mrf.mxu0
  %v108 = vadd.f32 %v33, %v107
  %109 = vdwg.mxu0
  %v110 = vmax.f32 %v106, 0.0
  %v111 = vmax.f32 %v108, 0.0
  %v112 = vld [vmem:[%s3] sm:$0x1]
  %v114 = vlaneseq
  %v115 = vshrl.u32 %v114, 7
  %v116 = vsub.s32 0, %v115
  %v117 = vrot.slane %v112, %v116
  %v119 = vmul.f32 %v110, %v117
  %vm120 = vcmask 220160
  %121 = vst.msk [vmem:[%s6] sm:$0xff] %vm120, %v119
  %122 = vrot.lane.b32.xlu0 %v117, 108
  %v123 = vpop.permute.xlu0 %122
  %v125 = vmul.f32 %v111, %v123
  %127 = vrot.lane.b32.xlu0 %v125, 20
  %v128 = vpop.permute.xlu0 %127
  %vm130 = vcmask 294104
  %131 = vst.msk [vmem:[%s6] sm:$0xff] %vm130, %v128
  %v132 = vld [vmem:[%s4] sm:$0x1]
  %v134 = vlaneseq
  %v135 = vshrl.u32 %v134, 7
  %v136 = vsub.s32 0, %v135
  %v137 = vrot.slane %v132, %v136
  %v139 = vmul.f32 %v110, %v137
  %vm140 = vcmask 367616
  %141 = vst.msk [vmem:[%s7] sm:$0xff] %vm140, %v139
  %142 = vrot.lane.b32.xlu0 %v137, 72
  %v143 = vpop.permute.xlu0 %142
  %v145 = vmul.f32 %v110, %v143
  %v146 = vmul.f32 %v111, %v143
  %149 = vrot.lane.b32.xlu0 %v145, 56
  %v150 = vpop.permute.xlu0 %149
  %151 = vrot.lane.b32.xlu0 %v146, 56
  %v152 = vpop.permute.xlu0 %151
  %vm153 = vcmask 457728
  %v154 = vsel %vm153, %v150, %v152
  %vm156 = vcmask 589160
  %157 = vst.msk [vmem:[%s7] sm:$0xff] %vm156, %v154
  %v158 = vld [vmem:[%s5] sm:$0x3]
  %v160 = vlaneseq
  %v161 = vshrl.u32 %v160, 7
  %v162 = vsub.s32 0, %v161
  %v163 = vrot.slane %v158, %v162
  %v164 = vlaneseq
  %v165 = vshrl.u32 %v164, 7
  %v166 = vsub.s32 1, %v165
  %v167 = vrot.slane %v158, %v166
  %v170 = vmul.f32 %v110, %v163
  %v171 = vmul.f32 %v111, %v167
  %172 = vst [vmem:[%s8] sm:$0xff] %v170
  %vm173 = vcmask 130048
  %174 = vst.msk [vmem:[%s8 + $0x8] sm:$0xff] %vm173, %v171
  %s175 = scalar_lea.vmem %s0, 16
  %v176 = vld [vmem:[%s175] sm:$0xff]
  %v177 = vld [vmem:[%s175 + $0x8] sm:$0xff]
  %178 = vmatprep.subr.mxu0 0.0
  %179 = vmatpush1.msra.mxu0 0.0
  %180 = vmatprep.subr.mxu0 0.0
  %181 = vmatpush1.msra.mxu0 0.0
  %182 = vmatprep.subr.mxu0 0.0
  %183 = vmatpush1.msra.mxu0 0.0
  %184 = vmatprep.subr.mxu0 0.0
  %185 = vmatpush1.msra.mxu0 0.0
  %186 = vmatprep.subr.mxu0 0.0
  %187 = vmatpush1.msra.mxu0 0.0
  %188 = vmatprep.subr.mxu0 0.0
  %189 = vmatpush1.msra.mxu0 0.0
  %190 = vmatprep.subr.mxu0 0.0
  %191 = vmatpush1.msra.mxu0 0.0
  %192 = vmatprep.subr.mxu0 0.0
  %193 = vmatpush1.msra.mxu0 0.0
  %194 = vmatprep.subr.mxu0 0.0
  %195 = vmatpush1.msra.mxu0 0.0
  %196 = vmatprep.subr.mxu0 0.0
  %197 = vmatpush1.msra.mxu0 0.0
  %198 = vmatprep.subr.mxu0 0.0
  %199 = vmatpush1.msra.mxu0 0.0
  %200 = vmatprep.subr.mxu0 0.0
  %201 = vmatpush1.msra.mxu0 0.0
  %202 = vmatprep.subr.mxu0 0.0
  %203 = vmatpush1.msra.mxu0 0.0
  %204 = vmatprep.subr.mxu0 0.0
  %205 = vmatpush1.msra.mxu0 0.0
  %206 = vmatprep.subr.mxu0 0.0
  %207 = vmatpush1.msra.mxu0 0.0
  %208 = vmatprep.subr.mxu0 %v177
  %209 = vmatpush1.msra.mxu0 %v176
  %210 = vmatprep.subr.mxu0 0.0
  %211 = vmatpush2.msra.mxu0 0.0
  %212 = vmatprep.subr.mxu0 0.0
  %213 = vmatpush2.msra.mxu0 0.0
  %214 = vmatprep.subr.mxu0 0.0
  %215 = vmatpush2.msra.mxu0 0.0
  %216 = vmatprep.subr.mxu0 0.0
  %217 = vmatpush2.msra.mxu0 0.0
  %218 = vmatprep.subr.mxu0 0.0
  %219 = vmatpush2.msra.mxu0 0.0
  %220 = vmatprep.subr.mxu0 0.0
  %221 = vmatpush2.msra.mxu0 0.0
  %222 = vmatprep.subr.mxu0 0.0
  %223 = vmatpush2.msra.mxu0 0.0
  %224 = vmatprep.subr.mxu0 0.0
  %225 = vmatpush2.msra.mxu0 0.0
  %226 = vmatprep.subr.mxu0 0.0
  %227 = vmatpush2.msra.mxu0 0.0
  %228 = vmatprep.subr.mxu0 0.0
  %229 = vmatpush2.msra.mxu0 0.0
  %230 = vmatprep.subr.mxu0 0.0
  %231 = vmatpush2.msra.mxu0 0.0
  %232 = vmatprep.subr.mxu0 0.0
  %233 = vmatpush2.msra.mxu0 0.0
  %234 = vmatprep.subr.mxu0 0.0
  %235 = vmatpush2.msra.mxu0 0.0
  %236 = vmatprep.subr.mxu0 0.0
  %237 = vmatpush2.msra.mxu0 0.0
  %238 = vmatprep.subr.mxu0 0.0
  %239 = vmatpush2.msra.mxu0 0.0
  %240 = vmatprep.subr.mxu0 0.0
  %241 = vmatpush2.msra.mxu0 0.0
  %242 = vmatprep.mubr.f32.mxu0 0.0
  %243 = vmatmul.mubr.f32.gmra.mxu0 %v37
  %v244 = vpop.f32.mrf.mxu0
  %v245 = vadd.f32 %v33, %v244
  %v246 = vpop.f32.mrf.mxu0
  %v247 = vadd.f32 %v33, %v246
  %248 = vdwg.mxu0
  %v249 = vmax.f32 %v245, 0.0
  %v250 = vmax.f32 %v247, 0.0
  %v251 = vld [vmem:[%s3] sm:$0x1]
  %v253 = vlaneseq
  %v254 = vshrl.u32 %v253, 7
  %v255 = vsub.s32 0, %v254
  %v256 = vrot.slane %v251, %v255
  %v258 = vmul.f32 %v249, %v256
  %s259 = scalar_lea.vmem %s6, 8
  %260 = vst.msk [vmem:[%s259] sm:$0xff] %vm120, %v258
  %261 = vrot.lane.b32.xlu0 %v256, 108
  %v262 = vpop.permute.xlu0 %261
  %v264 = vmul.f32 %v250, %v262
  %266 = vrot.lane.b32.xlu0 %v264, 20
  %v267 = vpop.permute.xlu0 %266
  %269 = vst.msk [vmem:[%s259] sm:$0xff] %vm130, %v267
  %v270 = vld [vmem:[%s4] sm:$0x1]
  %v272 = vlaneseq
  %v273 = vshrl.u32 %v272, 7
  %v274 = vsub.s32 0, %v273
  %v275 = vrot.slane %v270, %v274
  %v277 = vmul.f32 %v249, %v275
  %s278 = scalar_lea.vmem %s7, 8
  %279 = vst.msk [vmem:[%s278] sm:$0xff] %vm140, %v277
  %280 = vrot.lane.b32.xlu0 %v275, 72
  %v281 = vpop.permute.xlu0 %280
  %v283 = vmul.f32 %v249, %v281
  %v284 = vmul.f32 %v250, %v281
  %287 = vrot.lane.b32.xlu0 %v283, 56
  %v288 = vpop.permute.xlu0 %287
  %289 = vrot.lane.b32.xlu0 %v284, 56
  %v290 = vpop.permute.xlu0 %289
  %v291 = vsel %vm153, %v288, %v290
  %293 = vst.msk [vmem:[%s278] sm:$0xff] %vm156, %v291
  %v294 = vld [vmem:[%s5] sm:$0x3]
  %v296 = vlaneseq
  %v297 = vshrl.u32 %v296, 7
  %v298 = vsub.s32 0, %v297
  %v299 = vrot.slane %v294, %v298
  %v300 = vlaneseq
  %v301 = vshrl.u32 %v300, 7
  %v302 = vsub.s32 1, %v301
  %v303 = vrot.slane %v294, %v302
  %v306 = vmul.f32 %v249, %v299
  %v307 = vmul.f32 %v250, %v303
  %s308 = scalar_lea.vmem %s8, 16
  %309 = vst [vmem:[%s308] sm:$0xff] %v306
  %310 = vst.msk [vmem:[%s308 + $0x8] sm:$0xff] %vm173, %v307
  // Predicated region
  $region26: #{shu_org_forward.1} parent=0 // pred_check
    _
  $region27: #{shu_org_forward.1} parent=0 // pred_check_branch
    %312 = sbr.rel (0) target = $region29
  $region28: #{shu_org_forward.1} parent=0 // pred_region
    _
  $region29: #{shu_org_forward.1} parent=0 // pred_fallthru
    _
  // Predicated region
  $region30: #{shu_org_forward.1} parent=0 // pred_check
    _
  $region31: #{shu_org_forward.1} parent=0 // pred_check_branch
    %314 = sbr.rel (0) target = $region33
  $region32: #{shu_org_forward.1} parent=0 // pred_region
    _
  $region33: #{shu_org_forward.1} parent=0 // pred_fallthru
    _
  // Predicated region
  $region34: #{shu_org_forward.1} parent=0 // pred_check
    _
  $region35: #{shu_org_forward.1} parent=0 // pred_check_branch
    %316 = sbr.rel (0) target = $region37
  $region36: #{shu_org_forward.1} parent=0 // pred_region
    _
  $region37: #{shu_org_forward.1} parent=0 // pred_fallthru
    _
  // Predicated region
  $region38: #{shu_org_forward.1} parent=0 // pred_check
    _
  $region39: #{shu_org_forward.1} parent=0 // pred_check_branch
    %318 = sbr.rel (0) target = $region41
  $region40: #{shu_org_forward.1} parent=0 // pred_region
    _
  $region41: #{shu_org_forward.1} parent=0 // pred_fallthru
    _
  // Predicated region
  $region42: #{shu_org_forward.1} parent=0 // pred_check
    _
  $region43: #{shu_org_forward.1} parent=0 // pred_check_branch
    %320 = sbr.rel (0) target = $region45
  $region44: #{shu_org_forward.1} parent=0 // pred_region
    _
  $region45: #{shu_org_forward.1} parent=0 // pred_fallthru
    _
  // Predicated region
  $region46: #{shu_org_forward.1} parent=0 // pred_check
    _
  $region47: #{shu_org_forward.1} parent=0 // pred_check_branch
    %322 = sbr.rel (0) target = $region49
  $region48: #{shu_org_forward.1} parent=0 // pred_region
    _
  $region49: #{shu_org_forward.1} parent=0 // pred_fallthru
    _

// kernel: reverse.1
$region0: #{reverse.1}
  %s0 = inlined_call_operand.vmem [shape: f32[2,4,8,3], index: 0, kind: input, shape index: {}]
  %s1 = inlined_call_operand.vmem [shape: f32[2,4,8,3], index: 1, kind: output, shape index: {}]
  $region1: #{reverse.1} parent=0
    #allocation0 [shape = 'u8[65536]{0}', space=vmem, size = 0x10000, scoped, tag = 'operand span for operand 0']
    #allocation1 [shape = 'u8[32768]{0}', space=vmem, size = 0x8000, scoped, tag = 'packed  for operand 0']
    #allocation2 [shape = 'u8[32768]{0}', space=vmem, size = 0x8000, scoped, tag = 'operand span for operand 1']
    #allocation3 [shape = 'u8[16384]{0}', space=vmem, size = 0x4000, scoped, tag = 'packed  for operand 1']
    %s2 = scalar_lea.vmem [#allocation1], 4
    // Predicated region
    $region2: #{reverse.1} parent=1 // pred_check
      _
    $region3: #{reverse.1} parent=1 // pred_check_branch
      %4 = sbr.rel (0) target = $region5
    $region4: #{reverse.1} parent=1 // pred_region
      // Predicated region
      $region6: #{reverse.1} parent=4 // pred_check
        _
      $region7: #{reverse.1} parent=4 // pred_check_branch
        %6 = sbr.rel target = $region9
      $region8: #{reverse.1} parent=4 // pred_region
        // Predicated region
        $region21: #{reverse.1} parent=8 // pred_check
          _
        $region22: #{reverse.1} parent=8 // pred_check_branch
          %36 = sbr.rel (0) target = $region24
        $region23: #{reverse.1} parent=8 // pred_region
          loop: start=0, step=1, limit=1
          $region25: #{reverse.1} parent=23 // loop_pre_header
            _
          $region26: #{reverse.1} parent=23 // loop_header
            %s38 = sphi 0, %s42
            %p39 = scmp.ge.s32.totalorder %s38, 1
            %s43 = sphi %s0, %s0
            %s44 = sphi %s2, %s2
          $region27: #{reverse.1} parent=23 // loop_header_branch
            %41 = sbr.rel (%p39) target = $region31
          $region28: #{reverse.1} parent=23 // loop_body
            _
          $region29: #{reverse.1} parent=23 // loop_footer
            %s42 = sadd.s32 1, %s38
          $region30: #{reverse.1} parent=23 // loop_footer_branch
            %37 = sbr.rel target = $region26
          $region31: #{reverse.1} parent=23 // loop_exit
            _
          %s46 = ssub.s32 16, 1
          loop: start=0, step=1, limit=1
          $region32: #{reverse.1} parent=23 // loop_pre_header
            _
          $region33: #{reverse.1} parent=23 // loop_header
            %s48 = sphi 0, %s52
            %p49 = scmp.ge.s32.totalorder %s48, 1
            %s53 = sphi %s0, %s0
            %s54 = sphi %s2, %s2
          $region34: #{reverse.1} parent=23 // loop_header_branch
            %51 = sbr.rel (%p49) target = $region38
          $region35: #{reverse.1} parent=23 // loop_body
            %v55 = vld [vmem:[%s53] sm:%s46]
            %56 = vst [vmem:[%s54] sm:%s46] %v55
            %v57 = vld [vmem:[%s53 + $0x4] sm:%s46]
            %58 = vst [vmem:[%s54 + $0x8] sm:%s46] %v57
            %v59 = vld [vmem:[%s53 + $0x8] sm:%s46]
            %60 = vst [vmem:[%s54 + $0x10] sm:%s46] %v59
            %v61 = vld [vmem:[%s53 + $0xc] sm:%s46]
            %62 = vst [vmem:[%s54 + $0x18] sm:%s46] %v61
            %v63 = vld [vmem:[%s53 + $0x10] sm:%s46]
            %64 = vst [vmem:[%s54 + $0x20] sm:%s46] %v63
            %v65 = vld [vmem:[%s53 + $0x14] sm:%s46]
            %66 = vst [vmem:[%s54 + $0x28] sm:%s46] %v65
            %v67 = vld [vmem:[%s53 + $0x18] sm:%s46]
            %68 = vst [vmem:[%s54 + $0x30] sm:%s46] %v67
            %v69 = vld [vmem:[%s53 + $0x1c] sm:%s46]
            %70 = vst [vmem:[%s54 + $0x38] sm:%s46] %v69
          $region36: #{reverse.1} parent=23 // loop_footer
            %s52 = sadd.s32 1, %s48
          $region37: #{reverse.1} parent=23 // loop_footer_branch
            %47 = sbr.rel target = $region33
          $region38: #{reverse.1} parent=23 // loop_exit
            _
        $region24: #{reverse.1} parent=8 // pred_fallthru
          _
      $region9: #{reverse.1} parent=4 // pred_fallthru
        _
      // Predicated region
      $region10: #{reverse.1} parent=4 // pred_check
        _
      $region11: #{reverse.1} parent=4 // pred_check_branch
        %8 = sbr.rel (0) target = $region13
      $region12: #{reverse.1} parent=4 // pred_region
        %s10 = ssub.s32 16, 1
        loop: start=0, step=1, limit=1
        $region14: #{reverse.1} parent=12 // loop_pre_header
          _
        $region15: #{reverse.1} parent=12 // loop_header
          %s12 = sphi 0, %s16
          %p13 = scmp.ge.s32.totalorder %s12, 1
          %s17 = sphi %s0, %s0
          %s18 = sphi %s2, %s2
        $region16: #{reverse.1} parent=12 // loop_header_branch
          %15 = sbr.rel (%p13) target = $region20
        $region17: #{reverse.1} parent=12 // loop_body
          %v19 = vld [vmem:[%s17] sm:%s10]
          %20 = vst [vmem:[%s18] sm:%s10] %v19
          %v21 = vld [vmem:[%s17 + $0x4] sm:%s10]
          %22 = vst [vmem:[%s18 + $0x8] sm:%s10] %v21
          %v23 = vld [vmem:[%s17 + $0x8] sm:%s10]
          %24 = vst [vmem:[%s18 + $0x10] sm:%s10] %v23
          %v25 = vld [vmem:[%s17 + $0xc] sm:%s10]
          %26 = vst [vmem:[%s18 + $0x18] sm:%s10] %v25
          %v27 = vld [vmem:[%s17 + $0x10] sm:%s10]
          %28 = vst [vmem:[%s18 + $0x20] sm:%s10] %v27
          %v29 = vld [vmem:[%s17 + $0x14] sm:%s10]
          %30 = vst [vmem:[%s18 + $0x28] sm:%s10] %v29
          %v31 = vld [vmem:[%s17 + $0x18] sm:%s10]
          %32 = vst [vmem:[%s18 + $0x30] sm:%s10] %v31
          %v33 = vld [vmem:[%s17 + $0x1c] sm:%s10]
          %34 = vst [vmem:[%s18 + $0x38] sm:%s10] %v33
        $region18: #{reverse.1} parent=12 // loop_footer
          %s16 = sadd.s32 1, %s12
        $region19: #{reverse.1} parent=12 // loop_footer_branch
          %11 = sbr.rel target = $region15
        $region20: #{reverse.1} parent=12 // loop_exit
          _
      $region13: #{reverse.1} parent=4 // pred_fallthru
        _
    $region5: #{reverse.1} parent=1 // pred_fallthru
      _
    %71 = vnop
    %s73 = sshll.u32 1, 4
    %s74 = ssub.s32 %s73, 1
    %s75 = smul.addr 4, 15
    %s76 = scalar_lea.vmem [#allocation1], %s75
    %v77 = vld [vmem:[%s76] sm:%s74]
    %s78 = scalar_lea.vmem [#allocation0], 120
    %79 = vst [vmem:[%s78] sm:%s74] %v77
    %s80 = smul.addr 4, 14
    %s81 = scalar_lea.vmem [#allocation1], %s80
    %v82 = vld [vmem:[%s81] sm:%s74]
    %s83 = scalar_lea.vmem [#allocation0], 112
    %84 = vst [vmem:[%s83] sm:%s74] %v82
    %s85 = smul.addr 4, 13
    %s86 = scalar_lea.vmem [#allocation1], %s85
    %v87 = vld [vmem:[%s86] sm:%s74]
    %s88 = scalar_lea.vmem [#allocation0], 104
    %89 = vst [vmem:[%s88] sm:%s74] %v87
    %s90 = smul.addr 4, 12
    %s91 = scalar_lea.vmem [#allocation1], %s90
    %v92 = vld [vmem:[%s91] sm:%s74]
    %s93 = scalar_lea.vmem [#allocation0], 96
    %94 = vst [vmem:[%s93] sm:%s74] %v92
    %s95 = smul.addr 4, 11
    %s96 = scalar_lea.vmem [#allocation1], %s95
    %v97 = vld [vmem:[%s96] sm:%s74]
    %s98 = scalar_lea.vmem [#allocation0], 88
    %99 = vst [vmem:[%s98] sm:%s74] %v97
    %s100 = smul.addr 4, 10
    %s101 = scalar_lea.vmem [#allocation1], %s100
    %v102 = vld [vmem:[%s101] sm:%s74]
    %s103 = scalar_lea.vmem [#allocation0], 80
    %104 = vst [vmem:[%s103] sm:%s74] %v102
    %s105 = smul.addr 4, 9
    %s106 = scalar_lea.vmem [#allocation1], %s105
    %v107 = vld [vmem:[%s106] sm:%s74]
    %s108 = scalar_lea.vmem [#allocation0], 72
    %109 = vst [vmem:[%s108] sm:%s74] %v107
    %s110 = smul.addr 4, 8
    %s111 = scalar_lea.vmem [#allocation1], %s110
    %v112 = vld [vmem:[%s111] sm:%s74]
    %s113 = scalar_lea.vmem [#allocation0], 64
    %114 = vst [vmem:[%s113] sm:%s74] %v112
    %s115 = smul.addr 4, 7
    %s116 = scalar_lea.vmem [#allocation1], %s115
    %v117 = vld [vmem:[%s116] sm:%s74]
    %s118 = scalar_lea.vmem [#allocation0], 56
    %119 = vst [vmem:[%s118] sm:%s74] %v117
    %s120 = smul.addr 4, 6
    %s121 = scalar_lea.vmem [#allocation1], %s120
    %v122 = vld [vmem:[%s121] sm:%s74]
    %s123 = scalar_lea.vmem [#allocation0], 48
    %124 = vst [vmem:[%s123] sm:%s74] %v122
    %s125 = smul.addr 4, 5
    %s126 = scalar_lea.vmem [#allocation1], %s125
    %v127 = vld [vmem:[%s126] sm:%s74]
    %s128 = scalar_lea.vmem [#allocation0], 40
    %129 = vst [vmem:[%s128] sm:%s74] %v127
    %s130 = smul.addr 4, 4
    %s131 = scalar_lea.vmem [#allocation1], %s130
    %v132 = vld [vmem:[%s131] sm:%s74]
    %s133 = scalar_lea.vmem [#allocation0], 32
    %134 = vst [vmem:[%s133] sm:%s74] %v132
    %s135 = smul.addr 4, 3
    %s136 = scalar_lea.vmem [#allocation1], %s135
    %v137 = vld [vmem:[%s136] sm:%s74]
    %s138 = scalar_lea.vmem [#allocation0], 24
    %139 = vst [vmem:[%s138] sm:%s74] %v137
    %s140 = smul.addr 4, 2
    %s141 = scalar_lea.vmem [#allocation1], %s140
    %v142 = vld [vmem:[%s141] sm:%s74]
    %s143 = scalar_lea.vmem [#allocation0], 16
    %144 = vst [vmem:[%s143] sm:%s74] %v142
    %s145 = scalar_lea.vmem [#allocation1], 4
    %v146 = vld [vmem:[%s145] sm:%s74]
    %s147 = scalar_lea.vmem [#allocation0], 8
    %148 = vst [vmem:[%s147] sm:%s74] %v146
    %v149 = vld [vmem:[#allocation1] sm:%s74]
    %150 = vst [vmem:[#allocation0] sm:%s74] %v149
    %s151 = scalar_lea.vmem [#allocation0], 7
    %v152 = vld [vmem:[%s151] ss:$-1 sm:$0xff]
    %v153 = vrot.slane %v152, 5
    %154 = vst [vmem:[#allocation2] sm:$0xff] %v153
    %s155 = scalar_lea.vmem [#allocation0], 8
    %s156 = scalar_lea.vmem %s155, 7 [#allocation0]
    %v157 = vld [vmem:[%s156] ss:$-1 sm:$0xff]
    %v158 = vrot.slane %v157, 5
    %v159 = vlaneseq
    %v160 = vshrl.u32 %v159, 7
    %vm161 = vcmp.lt.s32.totalorder %v160, 3
    %162 = vst.msk [vmem:[#allocation2] sm:$0xff] %vm161, %v158
    %s163 = scalar_lea.vmem [#allocation2], 8
    %s164 = scalar_lea.vmem [#allocation0], 16
    %s165 = scalar_lea.vmem %s164, 7 [#allocation0]
    %v166 = vld [vmem:[%s165] ss:$-1 sm:$0xff]
    %v167 = vrot.slane %v166, 5
    %168 = vst [vmem:[%s163] sm:$0xff] %v167
    %s169 = scalar_lea.vmem %s164, 8 [#allocation0]
    %s170 = scalar_lea.vmem %s169, 7 [#allocation0]
    %v171 = vld [vmem:[%s170] ss:$-1 sm:$0xff]
    %v172 = vrot.slane %v171, 5
    %v173 = vlaneseq
    %v174 = vshrl.u32 %v173, 7
    %vm175 = vcmp.lt.s32.totalorder %v174, 3
    %176 = vst.msk [vmem:[%s163] sm:$0xff] %vm175, %v172
    %s177 = scalar_lea.vmem [#allocation2], 16
    %s178 = scalar_lea.vmem [#allocation0], 32
    %s179 = scalar_lea.vmem %s178, 7 [#allocation0]
    %v180 = vld [vmem:[%s179] ss:$-1 sm:$0xff]
    %v181 = vrot.slane %v180, 5
    %182 = vst [vmem:[%s177] sm:$0xff] %v181
    %s183 = scalar_lea.vmem %s178, 8 [#allocation0]
    %s184 = scalar_lea.vmem %s183, 7 [#allocation0]
    %v185 = vld [vmem:[%s184] ss:$-1 sm:$0xff]
    %v186 = vrot.slane %v185, 5
    %v187 = vlaneseq
    %v188 = vshrl.u32 %v187, 7
    %vm189 = vcmp.lt.s32.totalorder %v188, 3
    %190 = vst.msk [vmem:[%s177] sm:$0xff] %vm189, %v186
    %s191 = scalar_lea.vmem [#allocation2], 24
    %s192 = scalar_lea.vmem [#allocation0], 48
    %s193 = scalar_lea.vmem %s192, 7 [#allocation0]
    %v194 = vld [vmem:[%s193] ss:$-1 sm:$0xff]
    %v195 = vrot.slane %v194, 5
    %196 = vst [vmem:[%s191] sm:$0xff] %v195
    %s197 = scalar_lea.vmem %s192, 8 [#allocation0]
    %s198 = scalar_lea.vmem %s197, 7 [#allocation0]
    %v199 = vld [vmem:[%s198] ss:$-1 sm:$0xff]
    %v200 = vrot.slane %v199, 5
    %v201 = vlaneseq
    %v202 = vshrl.u32 %v201, 7
    %vm203 = vcmp.lt.s32.totalorder %v202, 3
    %204 = vst.msk [vmem:[%s191] sm:$0xff] %vm203, %v200
    %s205 = scalar_lea.vmem [#allocation2], 32
    %s206 = scalar_lea.vmem [#allocation0], 64
    %s207 = scalar_lea.vmem %s206, 7 [#allocation0]
    %v208 = vld [vmem:[%s207] ss:$-1 sm:$0xff]
    %v209 = vrot.slane %v208, 5
    %210 = vst [vmem:[%s205] sm:$0xff] %v209
    %s211 = scalar_lea.vmem %s206, 8 [#allocation0]
    %s212 = scalar_lea.vmem %s211, 7 [#allocation0]
    %v213 = vld [vmem:[%s212] ss:$-1 sm:$0xff]
    %v214 = vrot.slane %v213, 5
    %v215 = vlaneseq
    %v216 = vshrl.u32 %v215, 7
    %vm217 = vcmp.lt.s32.totalorder %v216, 3
    %218 = vst.msk [vmem:[%s205] sm:$0xff] %vm217, %v214
    %s219 = scalar_lea.vmem [#allocation2], 40
    %s220 = scalar_lea.vmem [#allocation0], 80
    %s221 = scalar_lea.vmem %s220, 7 [#allocation0]
    %v222 = vld [vmem:[%s221] ss:$-1 sm:$0xff]
    %v223 = vrot.slane %v222, 5
    %224 = vst [vmem:[%s219] sm:$0xff] %v223
    %s225 = scalar_lea.vmem %s220, 8 [#allocation0]
    %s226 = scalar_lea.vmem %s225, 7 [#allocation0]
    %v227 = vld [vmem:[%s226] ss:$-1 sm:$0xff]
    %v228 = vrot.slane %v227, 5
    %v229 = vlaneseq
    %v230 = vshrl.u32 %v229, 7
    %vm231 = vcmp.lt.s32.totalorder %v230, 3
    %232 = vst.msk [vmem:[%s219] sm:$0xff] %vm231, %v228
    %s233 = scalar_lea.vmem [#allocation2], 48
    %s234 = scalar_lea.vmem [#allocation0], 96
    %s235 = scalar_lea.vmem %s234, 7 [#allocation0]
    %v236 = vld [vmem:[%s235] ss:$-1 sm:$0xff]
    %v237 = vrot.slane %v236, 5
    %238 = vst [vmem:[%s233] sm:$0xff] %v237
    %s239 = scalar_lea.vmem %s234, 8 [#allocation0]
    %s240 = scalar_lea.vmem %s239, 7 [#allocation0]
    %v241 = vld [vmem:[%s240] ss:$-1 sm:$0xff]
    %v242 = vrot.slane %v241, 5
    %v243 = vlaneseq
    %v244 = vshrl.u32 %v243, 7
    %vm245 = vcmp.lt.s32.totalorder %v244, 3
    %246 = vst.msk [vmem:[%s233] sm:$0xff] %vm245, %v242
    %s247 = scalar_lea.vmem [#allocation2], 56
    %s248 = scalar_lea.vmem [#allocation0], 112
    %s249 = scalar_lea.vmem %s248, 7 [#allocation0]
    %v250 = vld [vmem:[%s249] ss:$-1 sm:$0xff]
    %v251 = vrot.slane %v250, 5
    %252 = vst [vmem:[%s247] sm:$0xff] %v251
    %s253 = scalar_lea.vmem %s248, 8 [#allocation0]
    %s254 = scalar_lea.vmem %s253, 7 [#allocation0]
    %v255 = vld [vmem:[%s254] ss:$-1 sm:$0xff]
    %v256 = vrot.slane %v255, 5
    %v257 = vlaneseq
    %v258 = vshrl.u32 %v257, 7
    %vm259 = vcmp.lt.s32.totalorder %v258, 3
    %260 = vst.msk [vmem:[%s247] sm:$0xff] %vm259, %v256
    %s262 = sshll.u32 1, 4
    %s263 = ssub.s32 %s262, 1
    %v265 = vld [vmem:[#allocation2] sm:%s263]
    %s266 = sshll.u32 1, 4
    %s267 = ssub.s32 %s266, 1
    %268 = vst [vmem:[#allocation3] sm:%s267] %v265
    %s269 = scalar_lea.vmem [#allocation2], 8
    %v270 = vld [vmem:[%s269] sm:%s263]
    %s271 = sshll.u32 1, 4
    %s272 = ssub.s32 %s271, 1
    %s273 = scalar_lea.vmem [#allocation3], 4
    %274 = vst [vmem:[%s273] sm:%s272] %v270
    %s275 = scalar_lea.vmem [#allocation2], 16
    %v276 = vld [vmem:[%s275] sm:%s263]
    %s277 = sshll.u32 1, 4
    %s278 = ssub.s32 %s277, 1
    %s279 = smul.addr 4, 2
    %s280 = scalar_lea.vmem [#allocation3], %s279
    %281 = vst [vmem:[%s280] sm:%s278] %v276
    %s282 = scalar_lea.vmem [#allocation2], 24
    %v283 = vld [vmem:[%s282] sm:%s263]
    %s284 = sshll.u32 1, 4
    %s285 = ssub.s32 %s284, 1
    %s286 = smul.addr 4, 3
    %s287 = scalar_lea.vmem [#allocation3], %s286
    %288 = vst [vmem:[%s287] sm:%s285] %v283
    %s289 = scalar_lea.vmem [#allocation2], 32
    %v290 = vld [vmem:[%s289] sm:%s263]
    %s291 = sshll.u32 1, 4
    %s292 = ssub.s32 %s291, 1
    %s293 = smul.addr 4, 4
    %s294 = scalar_lea.vmem [#allocation3], %s293
    %295 = vst [vmem:[%s294] sm:%s292] %v290
    %s296 = scalar_lea.vmem [#allocation2], 40
    %v297 = vld [vmem:[%s296] sm:%s263]
    %s298 = sshll.u32 1, 4
    %s299 = ssub.s32 %s298, 1
    %s300 = smul.addr 4, 5
    %s301 = scalar_lea.vmem [#allocation3], %s300
    %302 = vst [vmem:[%s301] sm:%s299] %v297
    %s303 = scalar_lea.vmem [#allocation2], 48
    %v304 = vld [vmem:[%s303] sm:%s263]
    %s305 = sshll.u32 1, 4
    %s306 = ssub.s32 %s305, 1
    %s307 = smul.addr 4, 6
    %s308 = scalar_lea.vmem [#allocation3], %s307
    %309 = vst [vmem:[%s308] sm:%s306] %v304
    %s310 = scalar_lea.vmem [#allocation2], 56
    %v311 = vld [vmem:[%s310] sm:%s263]
    %s312 = sshll.u32 1, 4
    %s313 = ssub.s32 %s312, 1
    %s314 = smul.addr 4, 7
    %s315 = scalar_lea.vmem [#allocation3], %s314
    %316 = vst [vmem:[%s315] sm:%s313] %v311
    // Predicated region
    $region39: #{reverse.1} parent=1 // pred_check
      _
    $region40: #{reverse.1} parent=1 // pred_check_branch
      %318 = sbr.rel (0) target = $region42
    $region41: #{reverse.1} parent=1 // pred_region
      // Predicated region
      $region43: #{reverse.1} parent=41 // pred_check
        _
      $region44: #{reverse.1} parent=41 // pred_check_branch
        %320 = sbr.rel target = $region46
      $region45: #{reverse.1} parent=41 // pred_region
        // Predicated region
        $region58: #{reverse.1} parent=45 // pred_check
          _
        $region59: #{reverse.1} parent=45 // pred_check_branch
          %350 = sbr.rel (0) target = $region61
        $region60: #{reverse.1} parent=45 // pred_region
          loop: start=0, step=1, limit=1
          $region62: #{reverse.1} parent=60 // loop_pre_header
            _
          $region63: #{reverse.1} parent=60 // loop_header
            %s352 = sphi 0, %s356
            %p353 = scmp.ge.s32.totalorder %s352, 1
            %s357 = sphi [#allocation3], [#allocation3]
            %s358 = sphi %s1, %s1
          $region64: #{reverse.1} parent=60 // loop_header_branch
            %355 = sbr.rel (%p353) target = $region68
          $region65: #{reverse.1} parent=60 // loop_body
            _
          $region66: #{reverse.1} parent=60 // loop_footer
            %s356 = sadd.s32 1, %s352
          $region67: #{reverse.1} parent=60 // loop_footer_branch
            %351 = sbr.rel target = $region63
          $region68: #{reverse.1} parent=60 // loop_exit
            _
          %s360 = ssub.s32 16, 1
          loop: start=0, step=1, limit=1
          $region69: #{reverse.1} parent=60 // loop_pre_header
            _
          $region70: #{reverse.1} parent=60 // loop_header
            %s362 = sphi 0, %s366
            %p363 = scmp.ge.s32.totalorder %s362, 1
            %s367 = sphi [#allocation3], [#allocation3]
            %s368 = sphi %s1, %s1
          $region71: #{reverse.1} parent=60 // loop_header_branch
            %365 = sbr.rel (%p363) target = $region75
          $region72: #{reverse.1} parent=60 // loop_body
            %v369 = vld [vmem:[%s367] sm:%s360]
            %370 = vst [vmem:[%s368] sm:%s360] %v369
            %v371 = vld [vmem:[%s367 + $0x4] sm:%s360]
            %372 = vst [vmem:[%s368 + $0x4] sm:%s360] %v371
            %v373 = vld [vmem:[%s367 + $0x8] sm:%s360]
            %374 = vst [vmem:[%s368 + $0x8] sm:%s360] %v373
            %v375 = vld [vmem:[%s367 + $0xc] sm:%s360]
            %376 = vst [vmem:[%s368 + $0xc] sm:%s360] %v375
            %v377 = vld [vmem:[%s367 + $0x10] sm:%s360]
            %378 = vst [vmem:[%s368 + $0x10] sm:%s360] %v377
            %v379 = vld [vmem:[%s367 + $0x14] sm:%s360]
            %380 = vst [vmem:[%s368 + $0x14] sm:%s360] %v379
            %v381 = vld [vmem:[%s367 + $0x18] sm:%s360]
            %382 = vst [vmem:[%s368 + $0x18] sm:%s360] %v381
            %v383 = vld [vmem:[%s367 + $0x1c] sm:%s360]
            %384 = vst [vmem:[%s368 + $0x1c] sm:%s360] %v383
          $region73: #{reverse.1} parent=60 // loop_footer
            %s366 = sadd.s32 1, %s362
          $region74: #{reverse.1} parent=60 // loop_footer_branch
            %361 = sbr.rel target = $region70
          $region75: #{reverse.1} parent=60 // loop_exit
            _
        $region61: #{reverse.1} parent=45 // pred_fallthru
          _
      $region46: #{reverse.1} parent=41 // pred_fallthru
        _
      // Predicated region
      $region47: #{reverse.1} parent=41 // pred_check
        _
      $region48: #{reverse.1} parent=41 // pred_check_branch
        %322 = sbr.rel (0) target = $region50
      $region49: #{reverse.1} parent=41 // pred_region
        %s324 = ssub.s32 16, 1
        loop: start=0, step=1, limit=1
        $region51: #{reverse.1} parent=49 // loop_pre_header
          _
        $region52: #{reverse.1} parent=49 // loop_header
          %s326 = sphi 0, %s330
          %p327 = scmp.ge.s32.totalorder %s326, 1
          %s331 = sphi [#allocation3], [#allocation3]
          %s332 = sphi %s1, %s1
        $region53: #{reverse.1} parent=49 // loop_header_branch
          %329 = sbr.rel (%p327) target = $region57
        $region54: #{reverse.1} parent=49 // loop_body
          %v333 = vld [vmem:[%s331] sm:%s324]
          %334 = vst [vmem:[%s332] sm:%s324] %v333
          %v335 = vld [vmem:[%s331 + $0x4] sm:%s324]
          %336 = vst [vmem:[%s332 + $0x4] sm:%s324] %v335
          %v337 = vld [vmem:[%s331 + $0x8] sm:%s324]
          %338 = vst [vmem:[%s332 + $0x8] sm:%s324] %v337
          %v339 = vld [vmem:[%s331 + $0xc] sm:%s324]
          %340 = vst [vmem:[%s332 + $0xc] sm:%s324] %v339
          %v341 = vld [vmem:[%s331 + $0x10] sm:%s324]
          %342 = vst [vmem:[%s332 + $0x10] sm:%s324] %v341
          %v343 = vld [vmem:[%s331 + $0x14] sm:%s324]
          %344 = vst [vmem:[%s332 + $0x14] sm:%s324] %v343
          %v345 = vld [vmem:[%s331 + $0x18] sm:%s324]
          %346 = vst [vmem:[%s332 + $0x18] sm:%s324] %v345
          %v347 = vld [vmem:[%s331 + $0x1c] sm:%s324]
          %348 = vst [vmem:[%s332 + $0x1c] sm:%s324] %v347
        $region55: #{reverse.1} parent=49 // loop_footer
          %s330 = sadd.s32 1, %s326
        $region56: #{reverse.1} parent=49 // loop_footer_branch
          %325 = sbr.rel target = $region52
        $region57: #{reverse.1} parent=49 // loop_exit
          _
      $region50: #{reverse.1} parent=41 // pred_fallthru
        _
    $region42: #{reverse.1} parent=1 // pred_fallthru
      _
    %385 = vnop

</llo_original>
